<compile_context>
chip_gen: v7x
topology: tpu7x:2x2x1
jax: 0.10.0
libtpu: 0.0.40
codegen_flags: <defaults>
</compile_context>

<pallas_src>
import functools

import jax
import jax.numpy as jnp
from jax.experimental import pallas as pl
from jax.experimental.pallas import tpu as pltpu

EPS = 1e-5
LANE = 128
_VMEM_LIMIT = 32 * 1024 * 1024          # safe scoped-VMEM budget on v5e / v6e / v7x
_HI = jax.lax.Precision.HIGHEST         # reference only


def _round_up(x, m):
    return (x + m - 1) // m * m


# ---------------------------------------------------------------------------
# Pallas kernels
# ---------------------------------------------------------------------------
def _conv_stats_kernel(p_ref, w_ref, y_ref, sum_ref, sq_ref):
    """One M-tile of conv-as-matmul (bf16 operands, f32 accum on the MXU) plus
    per-channel sum / sum-of-squares accumulated across the M grid axis."""
    y = jnp.dot(p_ref[...], w_ref[...], preferred_element_type=jnp.float32)
    y_ref[...] = y

    @pl.when(pl.program_id(0) == 0)
    def _():
        sum_ref[...] = jnp.zeros_like(sum_ref)
        sq_ref[...] = jnp.zeros_like(sq_ref)

    sum_ref[...] += jnp.sum(y, axis=0, keepdims=True)
    sq_ref[...] += jnp.sum(y * y, axis=0, keepdims=True)


def _bn_relu_kernel(y_ref, scale_ref, shift_ref, o_ref):
    """out = relu(y * scale + shift); scale/shift precomputed from batch stats."""
    o_ref[...] = jnp.maximum(
        y_ref[...] * scale_ref[...] + shift_ref[...], 0.0).astype(o_ref.dtype)


def _bn_add_relu_kernel(y_ref, res_ref, scale_ref, shift_ref, o_ref):
    """out = relu(y * scale + shift + residual)       -- identity shortcut."""
    o_ref[...] = jnp.maximum(
        y_ref[...] * scale_ref[...] + shift_ref[...] + res_ref[...], 0.0)


def _bn_proj_add_relu_kernel(y_ref, xs_ref, w3_ref, b3_ref,
                             scale_ref, shift_ref, o_ref):
    """out = relu(y * scale + shift + (xs @ w3 + b3)) -- fused 1x1-conv shortcut."""
    ident = jnp.dot(xs_ref[...], w3_ref[...],
                    preferred_element_type=jnp.float32) + b3_ref[...]
    o_ref[...] = jnp.maximum(
        y_ref[...] * scale_ref[...] + shift_ref[...] + ident, 0.0)


# ---------------------------------------------------------------------------
# pallas_call wrappers (gridded over M)
# ---------------------------------------------------------------------------
def _conv_stats(p, w, tm):
    mp, kp = p.shape
    cp = w.shape[1]
    return pl.pallas_call(
        _conv_stats_kernel,
        grid=(mp // tm,),
        in_specs=[pl.BlockSpec((tm, kp), lambda i: (i, 0)),     # patch tile (bf16)
                  pl.BlockSpec((kp, cp), lambda i: (0, 0))],    # resident weights
        out_specs=[pl.BlockSpec((tm, cp), lambda i: (i, 0)),    # conv output tile
                   pl.BlockSpec((1, cp), lambda i: (0, 0)),     # resident sum acc
                   pl.BlockSpec((1, cp), lambda i: (0, 0))],    # resident sumsq acc
        out_shape=[jax.ShapeDtypeStruct((mp, cp), jnp.float32),
                   jax.ShapeDtypeStruct((1, cp), jnp.float32),
                   jax.ShapeDtypeStruct((1, cp), jnp.float32)],
        compiler_params=pltpu.CompilerParams(
            dimension_semantics=("arbitrary",),   # stats accumulate across tiles
            vmem_limit_bytes=_VMEM_LIMIT),
    )(p, w)


def _elementwise_params(tm, cp):
    return pltpu.CompilerParams(dimension_semantics=("parallel",),
                                vmem_limit_bytes=_VMEM_LIMIT)


def _bn_relu(y, scale, shift, tm, out_dtype):
    mp, cp = y.shape
    return pl.pallas_call(
        _bn_relu_kernel,
        grid=(mp // tm,),
        in_specs=[pl.BlockSpec((tm, cp), lambda i: (i, 0)),
                  pl.BlockSpec((1, cp), lambda i: (0, 0)),
                  pl.BlockSpec((1, cp), lambda i: (0, 0))],
        out_specs=pl.BlockSpec((tm, cp), lambda i: (i, 0)),
        out_shape=jax.ShapeDtypeStruct((mp, cp), out_dtype),
        compiler_params=_elementwise_params(tm, cp),
    )(y, scale, shift)


def _bn_add_relu(y, res, scale, shift, tm):
    mp, cp = y.shape
    return pl.pallas_call(
        _bn_add_relu_kernel,
        grid=(mp // tm,),
        in_specs=[pl.BlockSpec((tm, cp), lambda i: (i, 0)),
                  pl.BlockSpec((tm, cp), lambda i: (i, 0)),
                  pl.BlockSpec((1, cp), lambda i: (0, 0)),
                  pl.BlockSpec((1, cp), lambda i: (0, 0))],
        out_specs=pl.BlockSpec((tm, cp), lambda i: (i, 0)),
        out_shape=jax.ShapeDtypeStruct((mp, cp), jnp.float32),
        compiler_params=_elementwise_params(tm, cp),
    )(y, res, scale, shift)


def _bn_proj_add_relu(y, xs, w3, b3, scale, shift, tm):
    mp, cp = y.shape
    cin_p = xs.shape[1]
    return pl.pallas_call(
        _bn_proj_add_relu_kernel,
        grid=(mp // tm,),
        in_specs=[pl.BlockSpec((tm, cp), lambda i: (i, 0)),
                  pl.BlockSpec((tm, cin_p), lambda i: (i, 0)),
                  pl.BlockSpec((cin_p, cp), lambda i: (0, 0)),   # resident w3
                  pl.BlockSpec((1, cp), lambda i: (0, 0)),
                  pl.BlockSpec((1, cp), lambda i: (0, 0)),
                  pl.BlockSpec((1, cp), lambda i: (0, 0))],
        out_specs=pl.BlockSpec((tm, cp), lambda i: (i, 0)),
        out_shape=jax.ShapeDtypeStruct((mp, cp), jnp.float32),
        compiler_params=_elementwise_params(tm, cp),
    )(y, xs, w3, b3, scale, shift)


# ---------------------------------------------------------------------------
# JAX glue: im2col / weight reshaping / padding (pure data movement)
# ---------------------------------------------------------------------------
def _im2col(x_pad, ksize, stride, ho, wo):
    """x_pad: (N, Hp, Wp, C) -> (N*ho*wo, k*k*C), patch order (kh, kw, ci)."""
    n, _, _, c = x_pad.shape
    patches = []
    for kh in range(ksize):
        for kw in range(ksize):
            sl = x_pad[:, kh:kh + (ho - 1) * stride + 1:stride,
                          kw:kw + (wo - 1) * stride + 1:stride, :]
            patches.append(sl)
    p = jnp.concatenate(patches, axis=-1)
    return p.reshape(n * ho * wo, ksize * ksize * c)


def _w_to_mat(w):
    """PyTorch conv weight (Cout, Cin, kh, kw) -> (kh*kw*Cin, Cout)."""
    cout, cin, kh, kw = w.shape
    return jnp.transpose(w, (2, 3, 1, 0)).reshape(kh * kw * cin, cout)


def _pad2(a, rows, cols):
    r, c = a.shape
    return jnp.pad(a, ((0, rows - r), (0, cols - c)))


def _bn_scale_shift(s, sq, count, gamma_p, beta_p):
    """Per-channel BN scale/shift from accumulated sum / sum-of-squares (tiny)."""
    mean = s / count
    var = jnp.maximum(sq / count - mean * mean, 0.0)   # biased, like PyTorch BN train
    scale = gamma_p * jax.lax.rsqrt(var + EPS)
    shift = beta_p - mean * scale
    return scale, shift


# ---------------------------------------------------------------------------
# ResidualBlock forward (wrapper)
# ---------------------------------------------------------------------------
@functools.partial(jax.jit, static_argnames=("stride", "use_1x1conv", "tm"))
def residual_block_forward(x_nchw, params, *, stride=1, use_1x1conv=False, tm=256):
    n, cin, h, w = x_nchw.shape
    cout = params["w1"].shape[0]
    ho = (h + 2 - 3) // stride + 1
    wo = (w + 2 - 3) // stride + 1
    m = n * ho * wo

    cp = _round_up(cout, LANE)          # lane-dense output channels
    k1p = _round_up(9 * cin, LANE)      # lane-dense contraction dims
    k2p = _round_up(9 * cout, LANE)
    cin_p = _round_up(cin, LANE)
    tm_eff = min(tm, _round_up(m, 8))
    mp = _round_up(m, tm_eff)

    # Conv biases b1/b2 are intentionally dropped (absorbed exactly by BN mean).
    w1m = _pad2(_w_to_mat(params["w1"]), k1p, cp).astype(jnp.bfloat16)
    w2m = _pad2(_w_to_mat(params["w2"]), k2p, cp).astype(jnp.bfloat16)
    g1 = _pad2(params["g1"].reshape(1, cout), 1, cp)
    be1 = _pad2(params["beta1"].reshape(1, cout), 1, cp)
    g2 = _pad2(params["g2"].reshape(1, cout), 1, cp)
    be2 = _pad2(params["beta2"].reshape(1, cout), 1, cp)

    x = jnp.transpose(x_nchw, (0, 2, 3, 1))                       # NHWC, f32
    x_pad = jnp.pad(x, ((0, 0), (1, 1), (1, 1), (0, 0)))

    # ---- conv1 (MXU) + batch-stat accumulation ----
    p1 = _pad2(_im2col(x_pad.astype(jnp.bfloat16), 3, stride, ho, wo), mp, k1p)
    y1, s1, q1 = _conv_stats(p1, w1m, tm_eff)
    scale1, shift1 = _bn_scale_shift(s1, q1, m, g1, be1)

    # ---- BN1 + ReLU ----
    out1 = _bn_relu(y1, scale1, shift1, tm_eff, jnp.float32)      # (mp, cp)

    # ---- conv2 (MXU) + batch-stat accumulation ----
    out1_img = out1[:m, :cout].reshape(n, ho, wo, cout)
    out1_pad = jnp.pad(out1_img, ((0, 0), (1, 1), (1, 1), (0, 0)))
    p2 = _pad2(_im2col(out1_pad.astype(jnp.bfloat16), 3, 1, ho, wo), mp, k2p)
    y2, s2, q2 = _conv_stats(p2, w2m, tm_eff)
    scale2, shift2 = _bn_scale_shift(s2, q2, m, g2, be2)

    # ---- BN2 + residual + ReLU ----
    if use_1x1conv:
        xs = x[:, ::stride, ::stride, :][:, :ho, :wo, :].reshape(m, cin)
        xs = _pad2(xs, mp, cin_p).astype(jnp.bfloat16)
        w3m = _pad2(jnp.transpose(params["w3"], (2, 3, 1, 0)).reshape(cin, cout),
                    cin_p, cp).astype(jnp.bfloat16)
        b3 = _pad2(params["b3"].reshape(1, cout), 1, cp)
        out_flat = _bn_proj_add_relu(y2, xs, w3m, b3, scale2, shift2, tm_eff)
    else:
        assert stride == 1 and cin == cout, "identity shortcut needs matching shapes"
        xs = _pad2(x.reshape(m, cin), mp, cp)                     # f32 residual add
        out_flat = _bn_add_relu(y2, xs, scale2, shift2, tm_eff)

    out = out_flat[:m, :cout].reshape(n, ho, wo, cout)
    return jnp.transpose(out, (0, 3, 1, 2))                       # back to NCHW


# ---------------------------------------------------------------------------
# Pure-JAX f32 reference (mirrors the PyTorch module, train-mode BatchNorm)
# ---------------------------------------------------------------------------
def _reference(x, params, *, stride=1, use_1x1conv=False):
    def conv(x, w, b, s, pad):
        y = jax.lax.conv_general_dilated(
            x, w, (s, s), [(pad, pad), (pad, pad)],
            dimension_numbers=("NCHW", "OIHW", "NCHW"), precision=_HI)
        return y + b.reshape(1, -1, 1, 1)

    def bn(y, g, b):
        mean = y.mean(axis=(0, 2, 3), keepdims=True)
        var = ((y - mean) ** 2).mean(axis=(0, 2, 3), keepdims=True)
        return g.reshape(1, -1, 1, 1) * (y - mean) / jnp.sqrt(var + EPS) \
            + b.reshape(1, -1, 1, 1)

    out = jax.nn.relu(bn(conv(x, params["w1"], params["b1"], stride, 1),
                         params["g1"], params["beta1"]))
    out = bn(conv(out, params["w2"], params["b2"], 1, 1),
             params["g2"], params["beta2"])
    ident = conv(x, params["w3"], params["b3"], stride, 0) if use_1x1conv else x
    return jax.nn.relu(out + ident)


def make_params(key, cin, cout):
    ks = jax.random.split(key, 8)
    return {
        "w1": 0.1 * jax.random.normal(ks[0], (cout, cin, 3, 3), jnp.float32),
        "b1": 0.1 * jax.random.normal(ks[1], (cout,), jnp.float32),
        "w2": 0.1 * jax.random.normal(ks[2], (cout, cout, 3, 3), jnp.float32),
        "b2": 0.1 * jax.random.normal(ks[3], (cout,), jnp.float32),
        "w3": 0.1 * jax.random.normal(ks[4], (cout, cin, 1, 1), jnp.float32),
        "b3": 0.1 * jax.random.normal(ks[5], (cout,), jnp.float32),
        "g1": 1.0 + 0.1 * jax.random.normal(ks[6], (cout,), jnp.float32),
        "beta1": 0.1 * jax.random.normal(ks[7], (cout,), jnp.float32),
        "g2": jnp.ones((cout,), jnp.float32),
        "beta2": jnp.zeros((cout,), jnp.float32),
    }


if __name__ == "__main__":
    key = jax.random.PRNGKey(0)
    kx1, kp1, kx2, kp2 = jax.random.split(key, 4)

    # bf16 MXU operands (per perf guidance) -> compare to f32 reference loosely.
    TOL = 5e-2

    # Case 1: projection shortcut (use_1x1conv=True), Cin != Cout.
    N, CIN, COUT, H, W = 2, 4, 8, 16, 16
    x1 = jax.random.normal(kx1, (N, CIN, H, W), jnp.float32)
    params1 = make_params(kp1, CIN, COUT)
    out1 = jax.block_until_ready(
        residual_block_forward(x1, params1, stride=1, use_1x1conv=True))
    ref1 = _reference(x1, params1, stride=1, use_1x1conv=True)
    assert out1.shape == ref1.shape == (N, COUT, H, W)
    assert jnp.allclose(out1, ref1, rtol=TOL, atol=TOL), \
        float(jnp.max(jnp.abs(out1 - ref1)))

    # Case 2: identity shortcut (use_1x1conv=False), Cin == Cout, stride 1.
    C2 = 8
    x2 = jax.random.normal(kx2, (N, C2, H, W), jnp.float32)
    params2 = make_params(kp2, C2, C2)
    out2 = jax.block_until_ready(
        residual_block_forward(x2, params2, stride=1, use_1x1conv=False))
    ref2 = _reference(x2, params2, stride=1, use_1x1conv=False)
    assert out2.shape == ref2.shape == (N, C2, H, W)
    assert jnp.allclose(out2, ref2, rtol=TOL, atol=TOL), \
        float(jnp.max(jnp.abs(out2 - ref2)))

    print("KERNEL_OK")
</pallas_src>

<mosaic_0001>
module attributes {stable_mosaic.version = 11 : i64} {
  func.func @_conv_stats_kernel(%arg0: i32, %arg1: memref<256x128xbf16, #tpu.memory_space<vmem>>, %arg2: memref<128x128xbf16, #tpu.memory_space<vmem>>, %arg3: memref<256x128xf32, #tpu.memory_space<vmem>>, %arg4: memref<1x128xf32, #tpu.memory_space<vmem>>, %arg5: memref<1x128xf32, #tpu.memory_space<vmem>>) attributes {dimension_semantics = [#tpu.dimension_semantics<arbitrary>], iteration_bounds = array<i64: 2>, scalar_prefetch = 0 : i64, scratch_operands = 0 : i64, tpu.core_type = #tpu.core_type<tc>, window_params = [{transform_indices = @transform_0, window_bounds = array<i64: 256, 128>}, {pipeline_mode = #tpu.pipeline_mode<synchronous>, transform_indices = @transform_1, window_bounds = array<i64: 128, 128>}, {transform_indices = @transform_2, window_bounds = array<i64: 256, 128>}, {pipeline_mode = #tpu.pipeline_mode<synchronous>, transform_indices = @transform_3, window_bounds = array<i64: 1, 128>}, {pipeline_mode = #tpu.pipeline_mode<synchronous>, transform_indices = @transform_4, window_bounds = array<i64: 1, 128>}]} {
    %c0 = arith.constant 0 : index
    %c0_0 = arith.constant 0 : index
    %0 = vector.load %arg1[%c0, %c0_0] : memref<256x128xbf16, #tpu.memory_space<vmem>>, vector<256x128xbf16>
    %c0_1 = arith.constant 0 : index
    %c0_2 = arith.constant 0 : index
    %1 = vector.load %arg2[%c0_1, %c0_2] : memref<128x128xbf16, #tpu.memory_space<vmem>>, vector<128x128xbf16>
    %cst = arith.constant dense<0.000000e+00> : vector<256x128xf32>
    %2 = tpu.matmul %0, %1, %cst {dimension_numbers = #tpu.dot_dimension_numbers<[1], [0], [0], [1], [0, 0, 1, 1], [], []>} : vector<256x128xbf16>, vector<128x128xbf16>, vector<256x128xf32> -> vector<256x128xf32>
    %c0_3 = arith.constant 0 : index
    %c0_4 = arith.constant 0 : index
    %3 = vector.load %arg3[%c0_3, %c0_4] : memref<256x128xf32, #tpu.memory_space<vmem>>, vector<256x128xf32>
    tpu.vector_store %arg3[%c0_3, %c0_4], %2 {strides = array<i32>} : memref<256x128xf32, #tpu.memory_space<vmem>>, vector<256x128xf32>,
    %c0_i32 = arith.constant 0 : i32
    %4 = arith.cmpi eq, %arg0, %c0_i32 : i32
    %5 = arith.extui %4 : i1 to i32
    %c0_i32_5 = arith.constant 0 : i32
    %6 = arith.cmpi ne, %5, %c0_i32_5 : i32
    scf.if %6 {
      %cst_16 = arith.constant 0.000000e+00 : f32
      %18 = vector.broadcast %cst_16 : f32 to vector<1x128xf32>
      %c0_17 = arith.constant 0 : index
      %c0_18 = arith.constant 0 : index
      %19 = vector.load %arg4[%c0_17, %c0_18] : memref<1x128xf32, #tpu.memory_space<vmem>>, vector<1x128xf32>
      tpu.vector_store %arg4[%c0_17, %c0_18], %18 {strides = array<i32>} : memref<1x128xf32, #tpu.memory_space<vmem>>, vector<1x128xf32>,
      %cst_19 = arith.constant 0.000000e+00 : f32
      %20 = vector.broadcast %cst_19 : f32 to vector<1x128xf32>
      %c0_20 = arith.constant 0 : index
      %c0_21 = arith.constant 0 : index
      %21 = vector.load %arg5[%c0_20, %c0_21] : memref<1x128xf32, #tpu.memory_space<vmem>>, vector<1x128xf32>
      tpu.vector_store %arg5[%c0_20, %c0_21], %20 {strides = array<i32>} : memref<1x128xf32, #tpu.memory_space<vmem>>, vector<1x128xf32>,
    } else {
    }
    %c0_6 = arith.constant 0 : index
    %c0_7 = arith.constant 0 : index
    %7 = vector.load %arg4[%c0_6, %c0_7] : memref<1x128xf32, #tpu.memory_space<vmem>>, vector<1x128xf32>
    %cst_8 = arith.constant dense<0.000000e+00> : vector<128xf32>
    %8 = vector.multi_reduction <add>, %2, %cst_8 [0] : vector<256x128xf32> to vector<128xf32>
    %9 = vector.shape_cast %8 : vector<128xf32> to vector<1x128xf32>
    %10 = arith.addf %7, %9 : vector<1x128xf32>
    %c0_9 = arith.constant 0 : index
    %c0_10 = arith.constant 0 : index
    %11 = vector.load %arg4[%c0_9, %c0_10] : memref<1x128xf32, #tpu.memory_space<vmem>>, vector<1x128xf32>
    tpu.vector_store %arg4[%c0_9, %c0_10], %10 {strides = array<i32>} : memref<1x128xf32, #tpu.memory_space<vmem>>, vector<1x128xf32>,
    %c0_11 = arith.constant 0 : index
    %c0_12 = arith.constant 0 : index
    %12 = vector.load %arg5[%c0_11, %c0_12] : memref<1x128xf32, #tpu.memory_space<vmem>>, vector<1x128xf32>
    %13 = arith.mulf %2, %2 : vector<256x128xf32>
    %cst_13 = arith.constant dense<0.000000e+00> : vector<128xf32>
    %14 = vector.multi_reduction <add>, %13, %cst_13 [0] : vector<256x128xf32> to vector<128xf32>
    %15 = vector.shape_cast %14 : vector<128xf32> to vector<1x128xf32>
    %16 = arith.addf %12, %15 : vector<1x128xf32>
    %c0_14 = arith.constant 0 : index
    %c0_15 = arith.constant 0 : index
    %17 = vector.load %arg5[%c0_14, %c0_15] : memref<1x128xf32, #tpu.memory_space<vmem>>, vector<1x128xf32>
    tpu.vector_store %arg5[%c0_14, %c0_15], %16 {strides = array<i32>} : memref<1x128xf32, #tpu.memory_space<vmem>>, vector<1x128xf32>,
    return
  }
  func.func @transform_0(%arg0: i32) -> (i32, i32) {
    %c0_i32 = arith.constant 0 : i32
    %c0_i32_0 = arith.constant 0 : i32
    return %arg0, %c0_i32 : i32, i32
  }
  func.func @transform_1(%arg0: i32) -> (i32, i32) {
    %c0_i32 = arith.constant 0 : i32
    %c0_i32_0 = arith.constant 0 : i32
    %c0_i32_1 = arith.constant 0 : i32
    return %c0_i32, %c0_i32_0 : i32, i32
  }
  func.func @transform_2(%arg0: i32) -> (i32, i32) {
    %c0_i32 = arith.constant 0 : i32
    %c0_i32_0 = arith.constant 0 : i32
    return %arg0, %c0_i32 : i32, i32
  }
  func.func @transform_3(%arg0: i32) -> (i32, i32) {
    %c0_i32 = arith.constant 0 : i32
    %c0_i32_0 = arith.constant 0 : i32
    %c0_i32_1 = arith.constant 0 : i32
    return %c0_i32, %c0_i32_0 : i32, i32
  }
  func.func @transform_4(%arg0: i32) -> (i32, i32) {
    %c0_i32 = arith.constant 0 : i32
    %c0_i32_0 = arith.constant 0 : i32
    %c0_i32_1 = arith.constant 0 : i32
    return %c0_i32, %c0_i32_0 : i32, i32
  }
}

module attributes {stable_mosaic.version = 11 : i64} {
  func.func @_bn_relu_kernel(%arg0: i32, %arg1: memref<256x128xf32, #tpu.memory_space<vmem>>, %arg2: memref<1x128xf32, #tpu.memory_space<vmem>>, %arg3: memref<1x128xf32, #tpu.memory_space<vmem>>, %arg4: memref<256x128xf32, #tpu.memory_space<vmem>>) attributes {dimension_semantics = [#tpu.dimension_semantics<parallel>], iteration_bounds = array<i64: 2>, scalar_prefetch = 0 : i64, scratch_operands = 0 : i64, tpu.core_type = #tpu.core_type<tc>, window_params = [{transform_indices = @transform_0, window_bounds = array<i64: 256, 128>}, {pipeline_mode = #tpu.pipeline_mode<synchronous>, transform_indices = @transform_1, window_bounds = array<i64: 1, 128>}, {pipeline_mode = #tpu.pipeline_mode<synchronous>, transform_indices = @transform_2, window_bounds = array<i64: 1, 128>}, {transform_indices = @transform_3, window_bounds = array<i64: 256, 128>}]} {
    %c0 = arith.constant 0 : index
    %c0_0 = arith.constant 0 : index
    %0 = vector.load %arg1[%c0, %c0_0] : memref<256x128xf32, #tpu.memory_space<vmem>>, vector<256x128xf32>
    %c0_1 = arith.constant 0 : index
    %c0_2 = arith.constant 0 : index
    %1 = vector.load %arg2[%c0_1, %c0_2] : memref<1x128xf32, #tpu.memory_space<vmem>>, vector<1x128xf32>
    %2 = vector.broadcast %1 : vector<1x128xf32> to vector<256x128xf32>
    %3 = arith.mulf %0, %2 : vector<256x128xf32>
    %c0_3 = arith.constant 0 : index
    %c0_4 = arith.constant 0 : index
    %4 = vector.load %arg3[%c0_3, %c0_4] : memref<1x128xf32, #tpu.memory_space<vmem>>, vector<1x128xf32>
    %5 = vector.broadcast %4 : vector<1x128xf32> to vector<256x128xf32>
    %6 = arith.addf %3, %5 : vector<256x128xf32>
    %cst = arith.constant 0.000000e+00 : f32
    %7 = vector.broadcast %cst : f32 to vector<256x128xf32>
    %8 = arith.maximumf %6, %7 : vector<256x128xf32>
    %c0_5 = arith.constant 0 : index
    %c0_6 = arith.constant 0 : index
    %9 = vector.load %arg4[%c0_5, %c0_6] : memref<256x128xf32, #tpu.memory_space<vmem>>, vector<256x128xf32>
    tpu.vector_store %arg4[%c0_5, %c0_6], %8 {strides = array<i32>} : memref<256x128xf32, #tpu.memory_space<vmem>>, vector<256x128xf32>,
    return
  }
  func.func @transform_0(%arg0: i32) -> (i32, i32) {
    %c0_i32 = arith.constant 0 : i32
    %c0_i32_0 = arith.constant 0 : i32
    return %arg0, %c0_i32 : i32, i32
  }
  func.func @transform_1(%arg0: i32) -> (i32, i32) {
    %c0_i32 = arith.constant 0 : i32
    %c0_i32_0 = arith.constant 0 : i32
    %c0_i32_1 = arith.constant 0 : i32
    return %c0_i32, %c0_i32_0 : i32, i32
  }
  func.func @transform_2(%arg0: i32) -> (i32, i32) {
    %c0_i32 = arith.constant 0 : i32
    %c0_i32_0 = arith.constant 0 : i32
    %c0_i32_1 = arith.constant 0 : i32
    return %c0_i32, %c0_i32_0 : i32, i32
  }
  func.func @transform_3(%arg0: i32) -> (i32, i32) {
    %c0_i32 = arith.constant 0 : i32
    %c0_i32_0 = arith.constant 0 : i32
    return %arg0, %c0_i32 : i32, i32
  }
}

module attributes {stable_mosaic.version = 11 : i64} {
  func.func @_bn_proj_add_relu_kernel(%arg0: i32, %arg1: memref<256x128xf32, #tpu.memory_space<vmem>>, %arg2: memref<256x128xbf16, #tpu.memory_space<vmem>>, %arg3: memref<128x128xbf16, #tpu.memory_space<vmem>>, %arg4: memref<1x128xf32, #tpu.memory_space<vmem>>, %arg5: memref<1x128xf32, #tpu.memory_space<vmem>>, %arg6: memref<1x128xf32, #tpu.memory_space<vmem>>, %arg7: memref<256x128xf32, #tpu.memory_space<vmem>>) attributes {dimension_semantics = [#tpu.dimension_semantics<parallel>], iteration_bounds = array<i64: 2>, scalar_prefetch = 0 : i64, scratch_operands = 0 : i64, tpu.core_type = #tpu.core_type<tc>, window_params = [{transform_indices = @transform_0, window_bounds = array<i64: 256, 128>}, {transform_indices = @transform_1, window_bounds = array<i64: 256, 128>}, {pipeline_mode = #tpu.pipeline_mode<synchronous>, transform_indices = @transform_2, window_bounds = array<i64: 128, 128>}, {pipeline_mode = #tpu.pipeline_mode<synchronous>, transform_indices = @transform_3, window_bounds = array<i64: 1, 128>}, {pipeline_mode = #tpu.pipeline_mode<synchronous>, transform_indices = @transform_4, window_bounds = array<i64: 1, 128>}, {pipeline_mode = #tpu.pipeline_mode<synchronous>, transform_indices = @transform_5, window_bounds = array<i64: 1, 128>}, {transform_indices = @transform_6, window_bounds = array<i64: 256, 128>}]} {
    %c0 = arith.constant 0 : index
    %c0_0 = arith.constant 0 : index
    %0 = vector.load %arg2[%c0, %c0_0] : memref<256x128xbf16, #tpu.memory_space<vmem>>, vector<256x128xbf16>
    %c0_1 = arith.constant 0 : index
    %c0_2 = arith.constant 0 : index
    %1 = vector.load %arg3[%c0_1, %c0_2] : memref<128x128xbf16, #tpu.memory_space<vmem>>, vector<128x128xbf16>
    %cst = arith.constant dense<0.000000e+00> : vector<256x128xf32>
    %2 = tpu.matmul %0, %1, %cst {dimension_numbers = #tpu.dot_dimension_numbers<[1], [0], [0], [1], [0, 0, 1, 1], [], []>} : vector<256x128xbf16>, vector<128x128xbf16>, vector<256x128xf32> -> vector<256x128xf32>
    %c0_3 = arith.constant 0 : index
    %c0_4 = arith.constant 0 : index
    %3 = vector.load %arg4[%c0_3, %c0_4] : memref<1x128xf32, #tpu.memory_space<vmem>>, vector<1x128xf32>
    %4 = vector.broadcast %3 : vector<1x128xf32> to vector<256x128xf32>
    %5 = arith.addf %2, %4 : vector<256x128xf32>
    %c0_5 = arith.constant 0 : index
    %c0_6 = arith.constant 0 : index
    %6 = vector.load %arg1[%c0_5, %c0_6] : memref<256x128xf32, #tpu.memory_space<vmem>>, vector<256x128xf32>
    %c0_7 = arith.constant 0 : index
    %c0_8 = arith.constant 0 : index
    %7 = vector.load %arg5[%c0_7, %c0_8] : memref<1x128xf32, #tpu.memory_space<vmem>>, vector<1x128xf32>
    %8 = vector.broadcast %7 : vector<1x128xf32> to vector<256x128xf32>
    %9 = arith.mulf %6, %8 : vector<256x128xf32>
    %c0_9 = arith.constant 0 : index
    %c0_10 = arith.constant 0 : index
    %10 = vector.load %arg6[%c0_9, %c0_10] : memref<1x128xf32, #tpu.memory_space<vmem>>, vector<1x128xf32>
    %11 = vector.broadcast %10 : vector<1x128xf32> to vector<256x128xf32>
    %12 = arith.addf %9, %11 : vector<256x128xf32>
    %13 = arith.addf %12, %5 : vector<256x128xf32>
    %cst_11 = arith.constant 0.000000e+00 : f32
    %14 = vector.broadcast %cst_11 : f32 to vector<256x128xf32>
    %15 = arith.maximumf %13, %14 : vector<256x128xf32>
    %c0_12 = arith.constant 0 : index
    %c0_13 = arith.constant 0 : index
    %16 = vector.load %arg7[%c0_12, %c0_13] : memref<256x128xf32, #tpu.memory_space<vmem>>, vector<256x128xf32>
    tpu.vector_store %arg7[%c0_12, %c0_13], %15 {strides = array<i32>} : memref<256x128xf32, #tpu.memory_space<vmem>>, vector<256x128xf32>,
    return
  }
  func.func @transform_0(%arg0: i32) -> (i32, i32) {
    %c0_i32 = arith.constant 0 : i32
    %c0_i32_0 = arith.constant 0 : i32
    return %arg0, %c0_i32 : i32, i32
  }
  func.func @transform_1(%arg0: i32) -> (i32, i32) {
    %c0_i32 = arith.constant 0 : i32
    %c0_i32_0 = arith.constant 0 : i32
    return %arg0, %c0_i32 : i32, i32
  }
  func.func @transform_2(%arg0: i32) -> (i32, i32) {
    %c0_i32 = arith.constant 0 : i32
    %c0_i32_0 = arith.constant 0 : i32
    %c0_i32_1 = arith.constant 0 : i32
    return %c0_i32, %c0_i32_0 : i32, i32
  }
  func.func @transform_3(%arg0: i32) -> (i32, i32) {
    %c0_i32 = arith.constant 0 : i32
    %c0_i32_0 = arith.constant 0 : i32
    %c0_i32_1 = arith.constant 0 : i32
    return %c0_i32, %c0_i32_0 : i32, i32
  }
  func.func @transform_4(%arg0: i32) -> (i32, i32) {
    %c0_i32 = arith.constant 0 : i32
    %c0_i32_0 = arith.constant 0 : i32
    %c0_i32_1 = arith.constant 0 : i32
    return %c0_i32, %c0_i32_0 : i32, i32
  }
  func.func @transform_5(%arg0: i32) -> (i32, i32) {
    %c0_i32 = arith.constant 0 : i32
    %c0_i32_0 = arith.constant 0 : i32
    %c0_i32_1 = arith.constant 0 : i32
    return %c0_i32, %c0_i32_0 : i32, i32
  }
  func.func @transform_6(%arg0: i32) -> (i32, i32) {
    %c0_i32 = arith.constant 0 : i32
    %c0_i32_0 = arith.constant 0 : i32
    return %arg0, %c0_i32 : i32, i32
  }
}

</mosaic_0001>

<llo_original>
// kernel: residual_block_forward.5
$region0: #{residual_block_forward.5}
  #allocation0 [shape = 'u32[]', space=smem, size = 0x4, offset = 0x4, fixed_abs, tag = 'smem constant byte address 0x4 - core index']
  #allocation1 [shape = 'u32[144,128]{1,0:T(1,128)}', space=vmem, size = 0x12000, scoped, tag = 'internal scratch']
  %s0 = inlined_call_operand.vmem [shape: f32[512,128], index: 0, kind: input, shape index: {}]
  %s1 = inlined_call_operand.vmem [shape: f32[1,128], index: 1, kind: input, shape index: {}]
  %s2 = inlined_call_operand.vmem [shape: f32[1,128], index: 2, kind: input, shape index: {}]
  %s3 = inlined_call_operand.vmem [shape: f32[512,128], index: 3, kind: output, shape index: {}]
  %s4 = sld [smem:[#allocation0]]
  $region45: #{residual_block_forward.5} parent=0
    _
  %s6 = ssub.s32 1, %s4
  %s7 = scalar_select 0, %s6, %s4
  loop: start=0, step=1, limit=4
  $region2: #{residual_block_forward.5} parent=0 // loop_pre_header
    _
  $region3: #{residual_block_forward.5} parent=0 // loop_header
    %s9 = sphi 0, %s13
    %p10 = scmp.ge.s32.totalorder %s9, 4
    %s19 = sphi 0, %s21
    %s22 = sphi 0, %s19
    %s23 = sphi 0, %s22
    %s39 = sphi 0, %s23
    %s43 = sphi 0, %s43
    %s45 = sphi 0, %s43
    %s46 = sphi 0, %s45
    %s60 = sphi 0, %s46
    %s64 = sphi 0, %s64
    %s66 = sphi 0, %s64
    %s67 = sphi 0, %s66
    %s81 = sphi 0, %s67
    %s87 = sphi 0, %s89
    %s90 = sphi 0, %s87
    %s91 = sphi 0, %s90
    %s107 = sphi 0, %s91
  $region4: #{residual_block_forward.5} parent=0 // loop_header_branch
    %12 = sbr.rel (%p10) target = $region8
  $region5: #{residual_block_forward.5} parent=0 // loop_body
    %s14 = ssub.s32 %s9, 1
    %s15 = ssub.s32 %s9, 2
    %s16 = sadd.s32 %s9, 1
    %s17 = ssub.s32 %s9, %s16
    %p18 = scmp.eq.s32.totalorder %s17, 0
    %s20 = sadd.s32 %s19, 1
    %s21 = scalar_select %p18, %s19, %s20
    %p24 = pneg %p18
    %p25 = scmp.eq.s32.totalorder %s9, 1
    %p26 = por %p24, %p25
    %p27 = scmp.ne.s32.totalorder %s19, %s22
    %p28 = scmp.eq.s32.totalorder %s9, 0
    %p29 = por %p27, %p28
    %p30 = scmp.ne.s32.totalorder %s19, %s22
    %p31 = scmp.eq.s32.totalorder %s14, 1
    %p32 = por %p30, %p31
    %p33 = scmp.ne.s32.totalorder %s22, %s23
    %p34 = scmp.eq.s32.totalorder %s14, 0
    %p35 = por %p33, %p34
    %p36 = scmp.ne.s32.totalorder %s22, %s23
    %p37 = scmp.eq.s32.totalorder %s15, 1
    %p38 = por %p36, %p37
    %p40 = scmp.ne.s32.totalorder %s23, %s39
    %p41 = scmp.eq.s32.totalorder %s15, 0
    %p42 = por %p40, %p41
    %s44 = sadd.s32 %s43, 1
    %p47 = scmp.eq.s32.totalorder %s9, 1
    %p48 = scmp.ne.s32.totalorder %s43, %s45
    %p49 = scmp.eq.s32.totalorder %s9, 0
    %p50 = por %p48, %p49
    %p51 = scmp.ne.s32.totalorder %s43, %s45
    %p52 = scmp.eq.s32.totalorder %s14, 1
    %p53 = por %p51, %p52
    %p54 = scmp.ne.s32.totalorder %s45, %s46
    %p55 = scmp.eq.s32.totalorder %s14, 0
    %p56 = por %p54, %p55
    %p57 = scmp.ne.s32.totalorder %s45, %s46
    %p58 = scmp.eq.s32.totalorder %s15, 1
    %p59 = por %p57, %p58
    %p61 = scmp.ne.s32.totalorder %s46, %s60
    %p62 = scmp.eq.s32.totalorder %s15, 0
    %p63 = por %p61, %p62
    %s65 = sadd.s32 %s64, 1
    %p68 = scmp.eq.s32.totalorder %s9, 1
    %p69 = scmp.ne.s32.totalorder %s64, %s66
    %p70 = scmp.eq.s32.totalorder %s9, 0
    %p71 = por %p69, %p70
    %p72 = scmp.ne.s32.totalorder %s64, %s66
    %p73 = scmp.eq.s32.totalorder %s14, 1
    %p74 = por %p72, %p73
    %p75 = scmp.ne.s32.totalorder %s66, %s67
    %p76 = scmp.eq.s32.totalorder %s14, 0
    %p77 = por %p75, %p76
    %p78 = scmp.ne.s32.totalorder %s66, %s67
    %p79 = scmp.eq.s32.totalorder %s15, 1
    %p80 = por %p78, %p79
    %p82 = scmp.ne.s32.totalorder %s67, %s81
    %p83 = scmp.eq.s32.totalorder %s15, 0
    %p84 = por %p82, %p83
    %s85 = ssub.s32 %s9, %s16
    %p86 = scmp.eq.s32.totalorder %s85, 0
    %s88 = sadd.s32 %s87, 1
    %s89 = scalar_select %p86, %s87, %s88
    %p92 = pneg %p86
    %p93 = scmp.eq.s32.totalorder %s9, 1
    %p94 = por %p92, %p93
    %p95 = scmp.ne.s32.totalorder %s87, %s90
    %p96 = scmp.eq.s32.totalorder %s9, 0
    %p97 = por %p95, %p96
    %p98 = scmp.ne.s32.totalorder %s87, %s90
    %p99 = scmp.eq.s32.totalorder %s14, 1
    %p100 = por %p98, %p99
    %p101 = scmp.ne.s32.totalorder %s90, %s91
    %p102 = scmp.eq.s32.totalorder %s14, 0
    %p103 = por %p101, %p102
    %p104 = scmp.ne.s32.totalorder %s90, %s91
    %p105 = scmp.eq.s32.totalorder %s15, 1
    %p106 = por %p104, %p105
    %p108 = scmp.ne.s32.totalorder %s91, %s107
    %p109 = scmp.eq.s32.totalorder %s15, 0
    %p110 = por %p108, %p109
    %p111 = scmp.le.s32.totalorder 1, %s9
    %p112 = scmp.lt.s32.totalorder %s9, 3
    %p113 = pnand %p111, %p112
    %p114 = pneg %p113
    // Predicated region
    $region9: #{residual_block_forward.5} parent=5 // pred_check
      _
    $region10: #{residual_block_forward.5} parent=5 // pred_check_branch
      %116 = sbr.rel (%p113) target = $region12
    $region11: #{residual_block_forward.5} parent=5 // pred_region
      %s117 = ssub.s32 %s9, 1
      // Predicated region
      $region13: #{residual_block_forward.5} parent=11 // pred_check
        %p118 = pneg %p56
      $region14: #{residual_block_forward.5} parent=11 // pred_check_branch
        %120 = sbr.rel (%p118) target = $region16
      $region15: #{residual_block_forward.5} parent=11 // pred_region
        _
      $region16: #{residual_block_forward.5} parent=11 // pred_fallthru
        _
      // Predicated region
      $region17: #{residual_block_forward.5} parent=11 // pred_check
        %p121 = pneg %p77
      $region18: #{residual_block_forward.5} parent=11 // pred_check_branch
        %123 = sbr.rel (%p121) target = $region20
      $region19: #{residual_block_forward.5} parent=11 // pred_region
        _
      $region20: #{residual_block_forward.5} parent=11 // pred_fallthru
        _
    $region12: #{residual_block_forward.5} parent=5 // pred_fallthru
      _
    %p124 = scmp.lt.s32.totalorder %s9, 2
    // Predicated region
    $region21: #{residual_block_forward.5} parent=5 // pred_check
      %p125 = pneg %p124
    $region22: #{residual_block_forward.5} parent=5 // pred_check_branch
      %127 = sbr.rel (%p125) target = $region24
    $region23: #{residual_block_forward.5} parent=5 // pred_region
      // Predicated region
      $region25: #{residual_block_forward.5} parent=23 // pred_check
        %p128 = pneg %p29
      $region26: #{residual_block_forward.5} parent=23 // pred_check_branch
        %130 = sbr.rel (%p128) target = $region28
      $region27: #{residual_block_forward.5} parent=23 // pred_region
        %s131 = smul.u32 32, %s9
        %p132 = scmp.lt.s32.totalorder %s131, 63
        %s133 = scalar_select %p132, %s131, 63
        %s134 = smul.addr %s133, 8
        %s135 = scalar_lea.vmem %s0, %s134
        %s136 = smul.u32 32, %s9
      $region28: #{residual_block_forward.5} parent=23 // pred_fallthru
        _
    $region24: #{residual_block_forward.5} parent=5 // pred_fallthru
      _
    %p137 = scmp.le.s32.totalorder 1, %s9
    %p138 = scmp.lt.s32.totalorder %s9, 3
    %p139 = pnand %p137, %p138
    %p140 = pneg %p139
    // Predicated region
    $region29: #{residual_block_forward.5} parent=5 // pred_check
      _
    $region30: #{residual_block_forward.5} parent=5 // pred_check_branch
      %142 = sbr.rel (%p139) target = $region32
    $region31: #{residual_block_forward.5} parent=5 // pred_region
      %s143 = ssub.s32 %s9, 1
      %s144 = smul.u32 32, %s14
      %p145 = scmp.lt.s32.totalorder %s144, 63
      %s146 = scalar_select %p145, %s144, 63
      %s147 = smul.addr %s146, 8
      %s148 = scalar_lea.vmem %s0, %s147
      %p149 = pneg %p35
      %p150 = pneg %p32
      %p151 = pneg %p56
      %p152 = pneg %p53
      %p153 = pneg %p77
      %p154 = pneg %p74
      %p155 = pneg %p103
      %p156 = pneg %p100
      %s157 = smul.u32 32, %s14
      %p158 = scmp.lt.s32.totalorder %s157, 63
      %s159 = scalar_select %p158, %s157, 63
      %s160 = smul.addr %s159, 8
      %s161 = scalar_lea.vmem %s3, %s160
      %s162 = smul.u32 32, %s14
      %p163 = scmp.lt.s32.totalorder %s162, 63
      %s164 = scalar_select %p163, %s162, 63
      %s165 = smul.addr %s164, 8
      %s166 = scalar_lea.vmem %s0, %s165
      %s167 = smul.u32 32, %s14
      %s168 = smul.u32 32, %s14
      %p169 = scmp.lt.s32.totalorder %s168, 63
      %s170 = scalar_select %p169, %s168, 63
      %s171 = smul.addr %s170, 8
      %s172 = scalar_lea.vmem %s3, %s171
      %s173 = smul.u32 32, %s14
      %v174 = vld [vmem:[%s166] sm:$0xff]
      %v175 = vld [vmem:[%s166 + $0x8] sm:$0xff]
      %v176 = vld [vmem:[%s166 + $0x10] sm:$0xff]
      %v177 = vld [vmem:[%s166 + $0x18] sm:$0xff]
      %v178 = vld [vmem:[%s166 + $0x20] sm:$0xff]
      %v179 = vld [vmem:[%s166 + $0x28] sm:$0xff]
      %v180 = vld [vmem:[%s166 + $0x30] sm:$0xff]
      %v181 = vld [vmem:[%s166 + $0x38] sm:$0xff]
      %v182 = vld [vmem:[%s166 + $0x40] sm:$0xff]
      %v183 = vld [vmem:[%s166 + $0x48] sm:$0xff]
      %v184 = vld [vmem:[%s166 + $0x50] sm:$0xff]
      %v185 = vld [vmem:[%s166 + $0x58] sm:$0xff]
      %v186 = vld [vmem:[%s166 + $0x60] sm:$0xff]
      %v187 = vld [vmem:[%s166 + $0x68] sm:$0xff]
      %v188 = vld [vmem:[%s166 + $0x70] sm:$0xff]
      %v189 = vld [vmem:[%s166 + $0x78] sm:$0xff]
      %v190 = vld [vmem:[%s166 + $0x80] sm:$0xff]
      %v191 = vld [vmem:[%s166 + $0x88] sm:$0xff]
      %v192 = vld [vmem:[%s166 + $0x90] sm:$0xff]
      %v193 = vld [vmem:[%s166 + $0x98] sm:$0xff]
      %v194 = vld [vmem:[%s166 + $0xa0] sm:$0xff]
      %v195 = vld [vmem:[%s166 + $0xa8] sm:$0xff]
      %v196 = vld [vmem:[%s166 + $0xb0] sm:$0xff]
      %v197 = vld [vmem:[%s166 + $0xb8] sm:$0xff]
      %v198 = vld [vmem:[%s166 + $0xc0] sm:$0xff]
      %v199 = vld [vmem:[%s166 + $0xc8] sm:$0xff]
      %v200 = vld [vmem:[%s166 + $0xd0] sm:$0xff]
      %v201 = vld [vmem:[%s166 + $0xd8] sm:$0xff]
      %v202 = vld [vmem:[%s166 + $0xe0] sm:$0xff]
      %v203 = vld [vmem:[%s166 + $0xe8] sm:$0xff]
      %v204 = vld [vmem:[%s166 + $0xf0] sm:$0xff]
      %v205 = vld [vmem:[%s166 + $0xf8] sm:$0xff]
      %v206 = vld [vmem:[%s1] sm:$0x1]
      %v208 = vlaneseq
      %v209 = vshrl.u32 %v208, 7
      %v210 = vsub.s32 0, %v209
      %v211 = vrot.slane %v206, %v210
      %v213 = vmul.f32 %v174, %v211
      %v214 = vmul.f32 %v175, %v211
      %v215 = vmul.f32 %v176, %v211
      %v216 = vmul.f32 %v177, %v211
      %v217 = vmul.f32 %v178, %v211
      %v218 = vmul.f32 %v179, %v211
      %v219 = vmul.f32 %v180, %v211
      %v220 = vmul.f32 %v181, %v211
      %v221 = vmul.f32 %v182, %v211
      %v222 = vmul.f32 %v183, %v211
      %v223 = vmul.f32 %v184, %v211
      %v224 = vmul.f32 %v185, %v211
      %v225 = vmul.f32 %v186, %v211
      %v226 = vmul.f32 %v187, %v211
      %v227 = vmul.f32 %v188, %v211
      %v228 = vmul.f32 %v189, %v211
      %v229 = vmul.f32 %v190, %v211
      %v230 = vmul.f32 %v191, %v211
      %v231 = vmul.f32 %v192, %v211
      %v232 = vmul.f32 %v193, %v211
      %v233 = vmul.f32 %v194, %v211
      %v234 = vmul.f32 %v195, %v211
      %v235 = vmul.f32 %v196, %v211
      %v236 = vmul.f32 %v197, %v211
      %v237 = vmul.f32 %v198, %v211
      %v238 = vmul.f32 %v199, %v211
      %v239 = vmul.f32 %v200, %v211
      %v240 = vmul.f32 %v201, %v211
      %v241 = vmul.f32 %v202, %v211
      %v242 = vmul.f32 %v203, %v211
      %v243 = vmul.f32 %v204, %v211
      %v244 = vmul.f32 %v205, %v211
      %v245 = vld [vmem:[%s2] sm:$0x1]
      %v247 = vlaneseq
      %v248 = vshrl.u32 %v247, 7
      %v249 = vsub.s32 0, %v248
      %v250 = vrot.slane %v245, %v249
      %v252 = vadd.f32 %v213, %v250
      %v253 = vadd.f32 %v214, %v250
      %v254 = vadd.f32 %v215, %v250
      %v255 = vadd.f32 %v216, %v250
      %v256 = vadd.f32 %v217, %v250
      %v257 = vadd.f32 %v218, %v250
      %v258 = vadd.f32 %v219, %v250
      %v259 = vadd.f32 %v220, %v250
      %v260 = vadd.f32 %v221, %v250
      %v261 = vadd.f32 %v222, %v250
      %v262 = vadd.f32 %v223, %v250
      %v263 = vadd.f32 %v224, %v250
      %v264 = vadd.f32 %v225, %v250
      %v265 = vadd.f32 %v226, %v250
      %v266 = vadd.f32 %v227, %v250
      %v267 = vadd.f32 %v228, %v250
      %v268 = vadd.f32 %v229, %v250
      %v269 = vadd.f32 %v230, %v250
      %v270 = vadd.f32 %v231, %v250
      %v271 = vadd.f32 %v232, %v250
      %v272 = vadd.f32 %v233, %v250
      %v273 = vadd.f32 %v234, %v250
      %v274 = vadd.f32 %v235, %v250
      %v275 = vadd.f32 %v236, %v250
      %v276 = vadd.f32 %v237, %v250
      %v277 = vadd.f32 %v238, %v250
      %v278 = vadd.f32 %v239, %v250
      %v279 = vadd.f32 %v240, %v250
      %v280 = vadd.f32 %v241, %v250
      %v281 = vadd.f32 %v242, %v250
      %v282 = vadd.f32 %v243, %v250
      %v283 = vadd.f32 %v244, %v250
      %v284 = vmax.f32 %v252, 0.0
      %v285 = vmax.f32 %v253, 0.0
      %v286 = vmax.f32 %v254, 0.0
      %v287 = vmax.f32 %v255, 0.0
      %v288 = vmax.f32 %v256, 0.0
      %v289 = vmax.f32 %v257, 0.0
      %v290 = vmax.f32 %v258, 0.0
      %v291 = vmax.f32 %v259, 0.0
      %v292 = vmax.f32 %v260, 0.0
      %v293 = vmax.f32 %v261, 0.0
      %v294 = vmax.f32 %v262, 0.0
      %v295 = vmax.f32 %v263, 0.0
      %v296 = vmax.f32 %v264, 0.0
      %v297 = vmax.f32 %v265, 0.0
      %v298 = vmax.f32 %v266, 0.0
      %v299 = vmax.f32 %v267, 0.0
      %v300 = vmax.f32 %v268, 0.0
      %v301 = vmax.f32 %v269, 0.0
      %v302 = vmax.f32 %v270, 0.0
      %v303 = vmax.f32 %v271, 0.0
      %v304 = vmax.f32 %v272, 0.0
      %v305 = vmax.f32 %v273, 0.0
      %v306 = vmax.f32 %v274, 0.0
      %v307 = vmax.f32 %v275, 0.0
      %v308 = vmax.f32 %v276, 0.0
      %v309 = vmax.f32 %v277, 0.0
      %v310 = vmax.f32 %v278, 0.0
      %v311 = vmax.f32 %v279, 0.0
      %v312 = vmax.f32 %v280, 0.0
      %v313 = vmax.f32 %v281, 0.0
      %v314 = vmax.f32 %v282, 0.0
      %v315 = vmax.f32 %v283, 0.0
      %316 = vst [vmem:[%s172] sm:$0xff] %v284
      %317 = vst [vmem:[%s172 + $0x8] sm:$0xff] %v285
      %318 = vst [vmem:[%s172 + $0x10] sm:$0xff] %v286
      %319 = vst [vmem:[%s172 + $0x18] sm:$0xff] %v287
      %320 = vst [vmem:[%s172 + $0x20] sm:$0xff] %v288
      %321 = vst [vmem:[%s172 + $0x28] sm:$0xff] %v289
      %322 = vst [vmem:[%s172 + $0x30] sm:$0xff] %v290
      %323 = vst [vmem:[%s172 + $0x38] sm:$0xff] %v291
      %324 = vst [vmem:[%s172 + $0x40] sm:$0xff] %v292
      %325 = vst [vmem:[%s172 + $0x48] sm:$0xff] %v293
      %326 = vst [vmem:[%s172 + $0x50] sm:$0xff] %v294
      %327 = vst [vmem:[%s172 + $0x58] sm:$0xff] %v295
      %328 = vst [vmem:[%s172 + $0x60] sm:$0xff] %v296
      %329 = vst [vmem:[%s172 + $0x68] sm:$0xff] %v297
      %330 = vst [vmem:[%s172 + $0x70] sm:$0xff] %v298
      %331 = vst [vmem:[%s172 + $0x78] sm:$0xff] %v299
      %332 = vst [vmem:[%s172 + $0x80] sm:$0xff] %v300
      %333 = vst [vmem:[%s172 + $0x88] sm:$0xff] %v301
      %334 = vst [vmem:[%s172 + $0x90] sm:$0xff] %v302
      %335 = vst [vmem:[%s172 + $0x98] sm:$0xff] %v303
      %336 = vst [vmem:[%s172 + $0xa0] sm:$0xff] %v304
      %337 = vst [vmem:[%s172 + $0xa8] sm:$0xff] %v305
      %338 = vst [vmem:[%s172 + $0xb0] sm:$0xff] %v306
      %339 = vst [vmem:[%s172 + $0xb8] sm:$0xff] %v307
      %340 = vst [vmem:[%s172 + $0xc0] sm:$0xff] %v308
      %341 = vst [vmem:[%s172 + $0xc8] sm:$0xff] %v309
      %342 = vst [vmem:[%s172 + $0xd0] sm:$0xff] %v310
      %343 = vst [vmem:[%s172 + $0xd8] sm:$0xff] %v311
      %344 = vst [vmem:[%s172 + $0xe0] sm:$0xff] %v312
      %345 = vst [vmem:[%s172 + $0xe8] sm:$0xff] %v313
      %346 = vst [vmem:[%s172 + $0xf0] sm:$0xff] %v314
      %347 = vst [vmem:[%s172 + $0xf8] sm:$0xff] %v315
      %s348 = smul.u32 32, %s14
      %p349 = scmp.lt.s32.totalorder %s348, 63
      %s350 = scalar_select %p349, %s348, 63
      %s351 = smul.addr %s350, 8
      %s352 = scalar_lea.vmem %s3, %s351
      // Predicated region
      $region33: #{residual_block_forward.5} parent=31 // pred_check
        %p353 = pneg %p100
      $region34: #{residual_block_forward.5} parent=31 // pred_check_branch
        %355 = sbr.rel (%p353) target = $region36
      $region35: #{residual_block_forward.5} parent=31 // pred_region
        %s356 = smul.u32 32, %s14
      $region36: #{residual_block_forward.5} parent=31 // pred_fallthru
        _
    $region32: #{residual_block_forward.5} parent=5 // pred_fallthru
      _
    %p357 = scmp.le.s32.totalorder 2, %s9
    // Predicated region
    $region37: #{residual_block_forward.5} parent=5 // pred_check
      %p358 = pneg %p357
    $region38: #{residual_block_forward.5} parent=5 // pred_check_branch
      %360 = sbr.rel (%p358) target = $region40
    $region39: #{residual_block_forward.5} parent=5 // pred_region
      %s361 = ssub.s32 %s9, 2
      // Predicated region
      $region41: #{residual_block_forward.5} parent=39 // pred_check
        %p362 = pneg %p106
      $region42: #{residual_block_forward.5} parent=39 // pred_check_branch
        %364 = sbr.rel (%p362) target = $region44
      $region43: #{residual_block_forward.5} parent=39 // pred_region
        %s365 = smul.u32 32, %s15
        %p366 = scmp.lt.s32.totalorder %s365, 63
        %s367 = scalar_select %p366, %s365, 63
        %s368 = smul.addr %s367, 8
        %s369 = scalar_lea.vmem %s3, %s368
      $region44: #{residual_block_forward.5} parent=39 // pred_fallthru
        _
    $region40: #{residual_block_forward.5} parent=5 // pred_fallthru
      _
  $region6: #{residual_block_forward.5} parent=0 // loop_footer
    %s13 = sadd.s32 1, %s9
  $region7: #{residual_block_forward.5} parent=0 // loop_footer_branch
    %8 = sbr.rel target = $region3
  $region8: #{residual_block_forward.5} parent=0 // loop_exit
    _

// kernel: residual_block_forward.4
$region0: #{residual_block_forward.4}
  #allocation0 [shape = 'u32[]', space=smem, size = 0x4, offset = 0x4, fixed_abs, tag = 'smem constant byte address 0x4 - core index']
  #allocation1 [shape = 'u32[144,128]{1,0:T(1,128)}', space=vmem, size = 0x12000, scoped, tag = 'internal scratch']
  %s0 = inlined_call_operand.vmem [shape: bf16[512,128], index: 0, kind: input, shape index: {}]
  %s1 = inlined_call_operand.vmem [shape: bf16[128,128], index: 1, kind: input, shape index: {}]
  %s2 = inlined_call_operand.vmem [shape: f32[512,128], index: 2, kind: output, shape index: {0}]
  %s3 = inlined_call_operand.vmem [shape: f32[1,128], index: 3, kind: output, shape index: {1}]
  %s4 = inlined_call_operand.vmem [shape: f32[1,128], index: 4, kind: output, shape index: {2}]
  %5 = xla_tuple %s2, %s3, %s4
  %s6 = sld [smem:[#allocation0]]
  $region61: #{residual_block_forward.4} parent=0
    _
  %s8 = ssub.s32 1, %s6
  %s9 = scalar_select 0, %s8, %s6
  loop: start=0, step=1, limit=4
  $region2: #{residual_block_forward.4} parent=0 // loop_pre_header
    _
  $region3: #{residual_block_forward.4} parent=0 // loop_header
    %s11 = sphi 0, %s15
    %p12 = scmp.ge.s32.totalorder %s11, 4
    %s21 = sphi 0, %s23
    %s24 = sphi 0, %s21
    %s25 = sphi 0, %s24
    %s41 = sphi 0, %s25
    %s45 = sphi 0, %s45
    %s47 = sphi 0, %s45
    %s48 = sphi 0, %s47
    %s62 = sphi 0, %s48
    %s68 = sphi 0, %s70
    %s71 = sphi 0, %s68
    %s72 = sphi 0, %s71
    %s88 = sphi 0, %s72
    %s92 = sphi 0, %s92
    %s94 = sphi 0, %s92
    %s95 = sphi 0, %s94
    %s109 = sphi 0, %s95
    %s113 = sphi 0, %s113
    %s115 = sphi 0, %s113
    %s116 = sphi 0, %s115
    %s130 = sphi 0, %s116
  $region4: #{residual_block_forward.4} parent=0 // loop_header_branch
    %14 = sbr.rel (%p12) target = $region8
  $region5: #{residual_block_forward.4} parent=0 // loop_body
    %s16 = ssub.s32 %s11, 1
    %s17 = ssub.s32 %s11, 2
    %s18 = sadd.s32 %s11, 1
    %s19 = ssub.s32 %s11, %s18
    %p20 = scmp.eq.s32.totalorder %s19, 0
    %s22 = sadd.s32 %s21, 1
    %s23 = scalar_select %p20, %s21, %s22
    %p26 = pneg %p20
    %p27 = scmp.eq.s32.totalorder %s11, 1
    %p28 = por %p26, %p27
    %p29 = scmp.ne.s32.totalorder %s21, %s24
    %p30 = scmp.eq.s32.totalorder %s11, 0
    %p31 = por %p29, %p30
    %p32 = scmp.ne.s32.totalorder %s21, %s24
    %p33 = scmp.eq.s32.totalorder %s16, 1
    %p34 = por %p32, %p33
    %p35 = scmp.ne.s32.totalorder %s24, %s25
    %p36 = scmp.eq.s32.totalorder %s16, 0
    %p37 = por %p35, %p36
    %p38 = scmp.ne.s32.totalorder %s24, %s25
    %p39 = scmp.eq.s32.totalorder %s17, 1
    %p40 = por %p38, %p39
    %p42 = scmp.ne.s32.totalorder %s25, %s41
    %p43 = scmp.eq.s32.totalorder %s17, 0
    %p44 = por %p42, %p43
    %s46 = sadd.s32 %s45, 1
    %p49 = scmp.eq.s32.totalorder %s11, 1
    %p50 = scmp.ne.s32.totalorder %s45, %s47
    %p51 = scmp.eq.s32.totalorder %s11, 0
    %p52 = por %p50, %p51
    %p53 = scmp.ne.s32.totalorder %s45, %s47
    %p54 = scmp.eq.s32.totalorder %s16, 1
    %p55 = por %p53, %p54
    %p56 = scmp.ne.s32.totalorder %s47, %s48
    %p57 = scmp.eq.s32.totalorder %s16, 0
    %p58 = por %p56, %p57
    %p59 = scmp.ne.s32.totalorder %s47, %s48
    %p60 = scmp.eq.s32.totalorder %s17, 1
    %p61 = por %p59, %p60
    %p63 = scmp.ne.s32.totalorder %s48, %s62
    %p64 = scmp.eq.s32.totalorder %s17, 0
    %p65 = por %p63, %p64
    %s66 = ssub.s32 %s11, %s18
    %p67 = scmp.eq.s32.totalorder %s66, 0
    %s69 = sadd.s32 %s68, 1
    %s70 = scalar_select %p67, %s68, %s69
    %p73 = pneg %p67
    %p74 = scmp.eq.s32.totalorder %s11, 1
    %p75 = por %p73, %p74
    %p76 = scmp.ne.s32.totalorder %s68, %s71
    %p77 = scmp.eq.s32.totalorder %s11, 0
    %p78 = por %p76, %p77
    %p79 = scmp.ne.s32.totalorder %s68, %s71
    %p80 = scmp.eq.s32.totalorder %s16, 1
    %p81 = por %p79, %p80
    %p82 = scmp.ne.s32.totalorder %s71, %s72
    %p83 = scmp.eq.s32.totalorder %s16, 0
    %p84 = por %p82, %p83
    %p85 = scmp.ne.s32.totalorder %s71, %s72
    %p86 = scmp.eq.s32.totalorder %s17, 1
    %p87 = por %p85, %p86
    %p89 = scmp.ne.s32.totalorder %s72, %s88
    %p90 = scmp.eq.s32.totalorder %s17, 0
    %p91 = por %p89, %p90
    %s93 = sadd.s32 %s92, 1
    %p96 = scmp.eq.s32.totalorder %s11, 1
    %p97 = scmp.ne.s32.totalorder %s92, %s94
    %p98 = scmp.eq.s32.totalorder %s11, 0
    %p99 = por %p97, %p98
    %p100 = scmp.ne.s32.totalorder %s92, %s94
    %p101 = scmp.eq.s32.totalorder %s16, 1
    %p102 = por %p100, %p101
    %p103 = scmp.ne.s32.totalorder %s94, %s95
    %p104 = scmp.eq.s32.totalorder %s16, 0
    %p105 = por %p103, %p104
    %p106 = scmp.ne.s32.totalorder %s94, %s95
    %p107 = scmp.eq.s32.totalorder %s17, 1
    %p108 = por %p106, %p107
    %p110 = scmp.ne.s32.totalorder %s95, %s109
    %p111 = scmp.eq.s32.totalorder %s17, 0
    %p112 = por %p110, %p111
    %s114 = sadd.s32 %s113, 1
    %p117 = scmp.eq.s32.totalorder %s11, 1
    %p118 = scmp.ne.s32.totalorder %s113, %s115
    %p119 = scmp.eq.s32.totalorder %s11, 0
    %p120 = por %p118, %p119
    %p121 = scmp.ne.s32.totalorder %s113, %s115
    %p122 = scmp.eq.s32.totalorder %s16, 1
    %p123 = por %p121, %p122
    %p124 = scmp.ne.s32.totalorder %s115, %s116
    %p125 = scmp.eq.s32.totalorder %s16, 0
    %p126 = por %p124, %p125
    %p127 = scmp.ne.s32.totalorder %s115, %s116
    %p128 = scmp.eq.s32.totalorder %s17, 1
    %p129 = por %p127, %p128
    %p131 = scmp.ne.s32.totalorder %s116, %s130
    %p132 = scmp.eq.s32.totalorder %s17, 0
    %p133 = por %p131, %p132
    %p134 = scmp.le.s32.totalorder 1, %s11
    %p135 = scmp.lt.s32.totalorder %s11, 3
    %p136 = pnand %p134, %p135
    %p137 = pneg %p136
    // Predicated region
    $region9: #{residual_block_forward.4} parent=5 // pred_check
      _
    $region10: #{residual_block_forward.4} parent=5 // pred_check_branch
      %139 = sbr.rel (%p136) target = $region12
    $region11: #{residual_block_forward.4} parent=5 // pred_region
      %s140 = ssub.s32 %s11, 1
      // Predicated region
      $region13: #{residual_block_forward.4} parent=11 // pred_check
        %p141 = pneg %p58
      $region14: #{residual_block_forward.4} parent=11 // pred_check_branch
        %143 = sbr.rel (%p141) target = $region16
      $region15: #{residual_block_forward.4} parent=11 // pred_region
        _
      $region16: #{residual_block_forward.4} parent=11 // pred_fallthru
        _
    $region12: #{residual_block_forward.4} parent=5 // pred_fallthru
      _
    %p144 = scmp.lt.s32.totalorder %s11, 2
    // Predicated region
    $region17: #{residual_block_forward.4} parent=5 // pred_check
      %p145 = pneg %p144
    $region18: #{residual_block_forward.4} parent=5 // pred_check_branch
      %147 = sbr.rel (%p145) target = $region20
    $region19: #{residual_block_forward.4} parent=5 // pred_region
      // Predicated region
      $region21: #{residual_block_forward.4} parent=19 // pred_check
        %p148 = pneg %p31
      $region22: #{residual_block_forward.4} parent=19 // pred_check_branch
        %150 = sbr.rel (%p148) target = $region24
      $region23: #{residual_block_forward.4} parent=19 // pred_region
        %s151 = smul.u32 32, %s11
        %p152 = scmp.lt.s32.totalorder %s151, 63
        %s153 = scalar_select %p152, %s151, 63
        %s154 = smul.addr %s153, 4
        %s155 = scalar_lea.vmem %s0, %s154
        %s156 = smul.u32 32, %s11
      $region24: #{residual_block_forward.4} parent=19 // pred_fallthru
        _
    $region20: #{residual_block_forward.4} parent=5 // pred_fallthru
      _
    %p157 = scmp.le.s32.totalorder 1, %s11
    %p158 = scmp.lt.s32.totalorder %s11, 3
    %p159 = pnand %p157, %p158
    %p160 = pneg %p159
    // Predicated region
    $region25: #{residual_block_forward.4} parent=5 // pred_check
      _
    $region26: #{residual_block_forward.4} parent=5 // pred_check_branch
      %162 = sbr.rel (%p159) target = $region28
    $region27: #{residual_block_forward.4} parent=5 // pred_region
      %s163 = ssub.s32 %s11, 1
      %s164 = smul.u32 32, %s16
      %p165 = scmp.lt.s32.totalorder %s164, 63
      %s166 = scalar_select %p165, %s164, 63
      %s167 = smul.addr %s166, 4
      %s168 = scalar_lea.vmem %s0, %s167
      %p169 = pneg %p37
      %p170 = pneg %p34
      %p171 = pneg %p58
      %p172 = pneg %p55
      %p173 = pneg %p84
      %p174 = pneg %p81
      %s175 = smul.u32 32, %s16
      %p176 = scmp.lt.s32.totalorder %s175, 63
      %s177 = scalar_select %p176, %s175, 63
      %s178 = smul.addr %s177, 8
      %s179 = scalar_lea.vmem %s2, %s178
      %p180 = pneg %p105
      %p181 = pneg %p102
      %p182 = pneg %p126
      %p183 = pneg %p123
      %s184 = smul.u32 32, %s16
      %p185 = scmp.lt.s32.totalorder %s184, 63
      %s186 = scalar_select %p185, %s184, 63
      %s187 = smul.addr %s186, 4
      %s188 = scalar_lea.vmem %s0, %s187
      %s189 = smul.u32 32, %s16
      %s190 = smul.u32 32, %s16
      %p191 = scmp.lt.s32.totalorder %s190, 63
      %s192 = scalar_select %p191, %s190, 63
      %s193 = smul.addr %s192, 8
      %s194 = scalar_lea.vmem %s2, %s193
      %s195 = smul.u32 32, %s16
      %v197 = vld [vmem:[%s188] sm:$0xf]
      %v198 = vld [vmem:[%s188 + $0x4] sm:$0xf]
      %v199 = vld [vmem:[%s188 + $0x8] sm:$0xf]
      %v200 = vld [vmem:[%s188 + $0xc] sm:$0xf]
      %v201 = vld [vmem:[%s188 + $0x10] sm:$0xf]
      %v202 = vld [vmem:[%s188 + $0x14] sm:$0xf]
      %v203 = vld [vmem:[%s188 + $0x18] sm:$0xf]
      %v204 = vld [vmem:[%s188 + $0x1c] sm:$0xf]
      %v205 = vld [vmem:[%s188 + $0x20] sm:$0xf]
      %v206 = vld [vmem:[%s188 + $0x24] sm:$0xf]
      %v207 = vld [vmem:[%s188 + $0x28] sm:$0xf]
      %v208 = vld [vmem:[%s188 + $0x2c] sm:$0xf]
      %v209 = vld [vmem:[%s188 + $0x30] sm:$0xf]
      %v210 = vld [vmem:[%s188 + $0x34] sm:$0xf]
      %v211 = vld [vmem:[%s188 + $0x38] sm:$0xf]
      %v212 = vld [vmem:[%s188 + $0x3c] sm:$0xf]
      %v213 = vld [vmem:[%s188 + $0x40] sm:$0xf]
      %v214 = vld [vmem:[%s188 + $0x44] sm:$0xf]
      %v215 = vld [vmem:[%s188 + $0x48] sm:$0xf]
      %v216 = vld [vmem:[%s188 + $0x4c] sm:$0xf]
      %v217 = vld [vmem:[%s188 + $0x50] sm:$0xf]
      %v218 = vld [vmem:[%s188 + $0x54] sm:$0xf]
      %v219 = vld [vmem:[%s188 + $0x58] sm:$0xf]
      %v220 = vld [vmem:[%s188 + $0x5c] sm:$0xf]
      %v221 = vld [vmem:[%s188 + $0x60] sm:$0xf]
      %v222 = vld [vmem:[%s188 + $0x64] sm:$0xf]
      %v223 = vld [vmem:[%s188 + $0x68] sm:$0xf]
      %v224 = vld [vmem:[%s188 + $0x6c] sm:$0xf]
      %v225 = vld [vmem:[%s188 + $0x70] sm:$0xf]
      %v226 = vld [vmem:[%s188 + $0x74] sm:$0xf]
      %v227 = vld [vmem:[%s188 + $0x78] sm:$0xf]
      %v228 = vld [vmem:[%s188 + $0x7c] sm:$0xf]
      %v229 = vld [vmem:[%s1] sm:$0xf]
      %v230 = vld [vmem:[%s1 + $0x4] sm:$0xf]
      %v231 = vld [vmem:[%s1 + $0x8] sm:$0xf]
      %v232 = vld [vmem:[%s1 + $0xc] sm:$0xf]
      %v233 = vld [vmem:[%s1 + $0x10] sm:$0xf]
      %v234 = vld [vmem:[%s1 + $0x14] sm:$0xf]
      %v235 = vld [vmem:[%s1 + $0x18] sm:$0xf]
      %v236 = vld [vmem:[%s1 + $0x1c] sm:$0xf]
      %v237 = vld [vmem:[%s1 + $0x20] sm:$0xf]
      %v238 = vld [vmem:[%s1 + $0x24] sm:$0xf]
      %v239 = vld [vmem:[%s1 + $0x28] sm:$0xf]
      %v240 = vld [vmem:[%s1 + $0x2c] sm:$0xf]
      %v241 = vld [vmem:[%s1 + $0x30] sm:$0xf]
      %v242 = vld [vmem:[%s1 + $0x34] sm:$0xf]
      %v243 = vld [vmem:[%s1 + $0x38] sm:$0xf]
      %v244 = vld [vmem:[%s1 + $0x3c] sm:$0xf]
      %v277 = vunpack.c.l.b16 %v197
      %v278 = vunpack.c.l.b16 %v198
      %v279 = vunpack.c.l.b16 %v199
      %v280 = vunpack.c.l.b16 %v200
      %v281 = vunpack.c.l.b16 %v201
      %v282 = vunpack.c.l.b16 %v202
      %v283 = vunpack.c.l.b16 %v203
      %v284 = vunpack.c.l.b16 %v204
      %v285 = vunpack.c.l.b16 %v205
      %v286 = vunpack.c.l.b16 %v206
      %v287 = vunpack.c.l.b16 %v207
      %v288 = vunpack.c.l.b16 %v208
      %v289 = vunpack.c.l.b16 %v209
      %v290 = vunpack.c.l.b16 %v210
      %v291 = vunpack.c.l.b16 %v211
      %v292 = vunpack.c.l.b16 %v212
      %v293 = vunpack.c.l.b16 %v213
      %v294 = vunpack.c.l.b16 %v214
      %v295 = vunpack.c.l.b16 %v215
      %v296 = vunpack.c.l.b16 %v216
      %v297 = vunpack.c.l.b16 %v217
      %v298 = vunpack.c.l.b16 %v218
      %v299 = vunpack.c.l.b16 %v219
      %v300 = vunpack.c.l.b16 %v220
      %v301 = vunpack.c.l.b16 %v221
      %v302 = vunpack.c.l.b16 %v222
      %v303 = vunpack.c.l.b16 %v223
      %v304 = vunpack.c.l.b16 %v224
      %v305 = vunpack.c.l.b16 %v225
      %v306 = vunpack.c.l.b16 %v226
      %v307 = vunpack.c.l.b16 %v227
      %v308 = vunpack.c.l.b16 %v228
      %v309 = vpack.c.b16 %v278, %v277
      %v310 = vpack.c.b16 %v280, %v279
      %v311 = vpack.c.b16 %v282, %v281
      %v312 = vpack.c.b16 %v284, %v283
      %v313 = vpack.c.b16 %v286, %v285
      %v314 = vpack.c.b16 %v288, %v287
      %v315 = vpack.c.b16 %v290, %v289
      %v316 = vpack.c.b16 %v292, %v291
      %v317 = vpack.c.b16 %v294, %v293
      %v318 = vpack.c.b16 %v296, %v295
      %v319 = vpack.c.b16 %v298, %v297
      %v320 = vpack.c.b16 %v300, %v299
      %v321 = vpack.c.b16 %v302, %v301
      %v322 = vpack.c.b16 %v304, %v303
      %v323 = vpack.c.b16 %v306, %v305
      %v324 = vpack.c.b16 %v308, %v307
      %v357 = vunpack.c.l.b16 %v229
      %v358 = vunpack.c.l.b16 %v230
      %v359 = vunpack.c.l.b16 %v231
      %v360 = vunpack.c.l.b16 %v232
      %v361 = vunpack.c.l.b16 %v233
      %v362 = vunpack.c.l.b16 %v234
      %v363 = vunpack.c.l.b16 %v235
      %v364 = vunpack.c.l.b16 %v236
      %v365 = vunpack.c.l.b16 %v237
      %v366 = vunpack.c.l.b16 %v238
      %v367 = vunpack.c.l.b16 %v239
      %v368 = vunpack.c.l.b16 %v240
      %v369 = vunpack.c.l.b16 %v241
      %v370 = vunpack.c.l.b16 %v242
      %v371 = vunpack.c.l.b16 %v243
      %v372 = vunpack.c.l.b16 %v244
      %v373 = vpack.c.b16 %v358, %v357
      %v374 = vpack.c.b16 %v360, %v359
      %v375 = vpack.c.b16 %v362, %v361
      %v376 = vpack.c.b16 %v364, %v363
      %v377 = vpack.c.b16 %v366, %v365
      %v378 = vpack.c.b16 %v368, %v367
      %v379 = vpack.c.b16 %v370, %v369
      %v380 = vpack.c.b16 %v372, %v371
      %389 = vmatprep.subr.bf16.mxu0 0
      %390 = vmatpush1.bf16.msra.mxu0 %v373
      %391 = vmatprep.subr.bf16.mxu0 0
      %392 = vmatpush1.bf16.msra.mxu0 %v374
      %393 = vmatprep.subr.bf16.mxu0 0
      %394 = vmatpush1.bf16.msra.mxu0 %v375
      %395 = vmatprep.subr.bf16.mxu0 0
      %396 = vmatpush1.bf16.msra.mxu0 %v376
      %397 = vmatprep.subr.bf16.mxu0 0
      %398 = vmatpush1.bf16.msra.mxu0 %v377
      %399 = vmatprep.subr.bf16.mxu0 0
      %400 = vmatpush1.bf16.msra.mxu0 %v378
      %401 = vmatprep.subr.bf16.mxu0 0
      %402 = vmatpush1.bf16.msra.mxu0 %v379
      %403 = vmatprep.subr.bf16.mxu0 0
      %404 = vmatpush1.bf16.msra.mxu0 %v380
      %405 = vmatprep.subr.bf16.mxu0 0
      %406 = vmatpush1.bf16.msra.mxu0 0
      %407 = vmatprep.subr.bf16.mxu0 0
      %408 = vmatpush1.bf16.msra.mxu0 0
      %409 = vmatprep.subr.bf16.mxu0 0
      %410 = vmatpush1.bf16.msra.mxu0 0
      %411 = vmatprep.subr.bf16.mxu0 0
      %412 = vmatpush1.bf16.msra.mxu0 0
      %413 = vmatprep.subr.bf16.mxu0 0
      %414 = vmatpush1.bf16.msra.mxu0 0
      %415 = vmatprep.subr.bf16.mxu0 0
      %416 = vmatpush1.bf16.msra.mxu0 0
      %417 = vmatprep.subr.bf16.mxu0 0
      %418 = vmatpush1.bf16.msra.mxu0 0
      %419 = vmatprep.subr.bf16.mxu0 0
      %420 = vmatpush1.bf16.msra.mxu0 0
      %421 = vmatprep.mubr.bf16.mxu0 0
      %422 = vmatmul.mubr.bf16.gmra.mrb[0].mxu0 %v309
      %v423 = vpop.f32.mrb[0].mxu0
      %v424 = vadd.f32 0.0, %v423
      %v425 = vpop.f32.mrb[0].mxu0
      %v426 = vpop.f32.mrb[0].mxu0
      %v427 = vadd.f32 0.0, %v426
      %v428 = vpop.f32.mrb[0].mxu0
      %429 = vmatprep.mubr.bf16.mxu0 0
      %430 = vmatmul.mubr.bf16.gmra.mrb[0].mxu0 %v310
      %v431 = vpop.f32.mrb[0].mxu0
      %v432 = vadd.f32 0.0, %v431
      %v433 = vpop.f32.mrb[0].mxu0
      %v434 = vpop.f32.mrb[0].mxu0
      %v435 = vadd.f32 0.0, %v434
      %v436 = vpop.f32.mrb[0].mxu0
      %437 = vmatprep.mubr.bf16.mxu0 0
      %438 = vmatmul.mubr.bf16.gmra.mrb[0].mxu0 %v311
      %v439 = vpop.f32.mrb[0].mxu0
      %v440 = vadd.f32 0.0, %v439
      %v441 = vpop.f32.mrb[0].mxu0
      %v442 = vpop.f32.mrb[0].mxu0
      %v443 = vadd.f32 0.0, %v442
      %v444 = vpop.f32.mrb[0].mxu0
      %445 = vmatprep.mubr.bf16.mxu0 0
      %446 = vmatmul.mubr.bf16.gmra.mrb[0].mxu0 %v312
      %v447 = vpop.f32.mrb[0].mxu0
      %v448 = vadd.f32 0.0, %v447
      %v449 = vpop.f32.mrb[0].mxu0
      %v450 = vpop.f32.mrb[0].mxu0
      %v451 = vadd.f32 0.0, %v450
      %v452 = vpop.f32.mrb[0].mxu0
      %453 = vmatprep.mubr.bf16.mxu0 0
      %454 = vmatmul.mubr.bf16.gmra.mrb[0].mxu0 %v313
      %v455 = vpop.f32.mrb[0].mxu0
      %v456 = vadd.f32 0.0, %v455
      %v457 = vpop.f32.mrb[0].mxu0
      %v458 = vpop.f32.mrb[0].mxu0
      %v459 = vadd.f32 0.0, %v458
      %v460 = vpop.f32.mrb[0].mxu0
      %461 = vmatprep.mubr.bf16.mxu0 0
      %462 = vmatmul.mubr.bf16.gmra.mrb[0].mxu0 %v314
      %v463 = vpop.f32.mrb[0].mxu0
      %v464 = vadd.f32 0.0, %v463
      %v465 = vpop.f32.mrb[0].mxu0
      %v466 = vpop.f32.mrb[0].mxu0
      %v467 = vadd.f32 0.0, %v466
      %v468 = vpop.f32.mrb[0].mxu0
      %469 = vmatprep.mubr.bf16.mxu0 0
      %470 = vmatmul.mubr.bf16.gmra.mrb[0].mxu0 %v315
      %v471 = vpop.f32.mrb[0].mxu0
      %v472 = vadd.f32 0.0, %v471
      %v473 = vpop.f32.mrb[0].mxu0
      %v474 = vpop.f32.mrb[0].mxu0
      %v475 = vadd.f32 0.0, %v474
      %v476 = vpop.f32.mrb[0].mxu0
      %477 = vmatprep.mubr.bf16.mxu0 0
      %478 = vmatmul.mubr.bf16.gmra.mrb[0].mxu0 %v316
      %v479 = vpop.f32.mrb[0].mxu0
      %v480 = vadd.f32 0.0, %v479
      %v481 = vpop.f32.mrb[0].mxu0
      %v482 = vpop.f32.mrb[0].mxu0
      %v483 = vadd.f32 0.0, %v482
      %v484 = vpop.f32.mrb[0].mxu0
      %485 = vmatprep.mubr.bf16.mxu0 0
      %486 = vmatmul.mubr.bf16.gmra.mrb[0].mxu0 %v317
      %v487 = vpop.f32.mrb[0].mxu0
      %v488 = vadd.f32 0.0, %v487
      %v489 = vpop.f32.mrb[0].mxu0
      %v490 = vpop.f32.mrb[0].mxu0
      %v491 = vadd.f32 0.0, %v490
      %v492 = vpop.f32.mrb[0].mxu0
      %493 = vmatprep.mubr.bf16.mxu0 0
      %494 = vmatmul.mubr.bf16.gmra.mrb[0].mxu0 %v318
      %v495 = vpop.f32.mrb[0].mxu0
      %v496 = vadd.f32 0.0, %v495
      %v497 = vpop.f32.mrb[0].mxu0
      %v498 = vpop.f32.mrb[0].mxu0
      %v499 = vadd.f32 0.0, %v498
      %v500 = vpop.f32.mrb[0].mxu0
      %501 = vmatprep.mubr.bf16.mxu0 0
      %502 = vmatmul.mubr.bf16.gmra.mrb[0].mxu0 %v319
      %v503 = vpop.f32.mrb[0].mxu0
      %v504 = vadd.f32 0.0, %v503
      %v505 = vpop.f32.mrb[0].mxu0
      %v506 = vpop.f32.mrb[0].mxu0
      %v507 = vadd.f32 0.0, %v506
      %v508 = vpop.f32.mrb[0].mxu0
      %509 = vmatprep.mubr.bf16.mxu0 0
      %510 = vmatmul.mubr.bf16.gmra.mrb[0].mxu0 %v320
      %v511 = vpop.f32.mrb[0].mxu0
      %v512 = vadd.f32 0.0, %v511
      %v513 = vpop.f32.mrb[0].mxu0
      %v514 = vpop.f32.mrb[0].mxu0
      %v515 = vadd.f32 0.0, %v514
      %v516 = vpop.f32.mrb[0].mxu0
      %517 = vmatprep.mubr.bf16.mxu0 0
      %518 = vmatmul.mubr.bf16.gmra.mrb[0].mxu0 %v321
      %v519 = vpop.f32.mrb[0].mxu0
      %v520 = vadd.f32 0.0, %v519
      %v521 = vpop.f32.mrb[0].mxu0
      %v522 = vpop.f32.mrb[0].mxu0
      %v523 = vadd.f32 0.0, %v522
      %v524 = vpop.f32.mrb[0].mxu0
      %525 = vmatprep.mubr.bf16.mxu0 0
      %526 = vmatmul.mubr.bf16.gmra.mrb[0].mxu0 %v322
      %v527 = vpop.f32.mrb[0].mxu0
      %v528 = vadd.f32 0.0, %v527
      %v529 = vpop.f32.mrb[0].mxu0
      %v530 = vpop.f32.mrb[0].mxu0
      %v531 = vadd.f32 0.0, %v530
      %v532 = vpop.f32.mrb[0].mxu0
      %533 = vmatprep.mubr.bf16.mxu0 0
      %534 = vmatmul.mubr.bf16.gmra.mrb[0].mxu0 %v323
      %v535 = vpop.f32.mrb[0].mxu0
      %v536 = vadd.f32 0.0, %v535
      %v537 = vpop.f32.mrb[0].mxu0
      %v538 = vpop.f32.mrb[0].mxu0
      %v539 = vadd.f32 0.0, %v538
      %v540 = vpop.f32.mrb[0].mxu0
      %541 = vmatprep.mubr.bf16.mxu0 0
      %542 = vmatmul.mubr.bf16.gmra.mrb[0].mxu0 %v324
      %v543 = vpop.f32.mrb[0].mxu0
      %v544 = vadd.f32 0.0, %v543
      %v545 = vpop.f32.mrb[0].mxu0
      %v546 = vpop.f32.mrb[0].mxu0
      %v547 = vadd.f32 0.0, %v546
      %v548 = vpop.f32.mrb[0].mxu0
      %549 = vdwg.mxu0
      %550 = vst [vmem:[%s194] sm:$0xff] %v424
      %551 = vst [vmem:[%s194 + $0x8] sm:$0xff] %v427
      %552 = vst [vmem:[%s194 + $0x10] sm:$0xff] %v432
      %553 = vst [vmem:[%s194 + $0x18] sm:$0xff] %v435
      %554 = vst [vmem:[%s194 + $0x20] sm:$0xff] %v440
      %555 = vst [vmem:[%s194 + $0x28] sm:$0xff] %v443
      %556 = vst [vmem:[%s194 + $0x30] sm:$0xff] %v448
      %557 = vst [vmem:[%s194 + $0x38] sm:$0xff] %v451
      %558 = vst [vmem:[%s194 + $0x40] sm:$0xff] %v456
      %559 = vst [vmem:[%s194 + $0x48] sm:$0xff] %v459
      %560 = vst [vmem:[%s194 + $0x50] sm:$0xff] %v464
      %561 = vst [vmem:[%s194 + $0x58] sm:$0xff] %v467
      %562 = vst [vmem:[%s194 + $0x60] sm:$0xff] %v472
      %563 = vst [vmem:[%s194 + $0x68] sm:$0xff] %v475
      %564 = vst [vmem:[%s194 + $0x70] sm:$0xff] %v480
      %565 = vst [vmem:[%s194 + $0x78] sm:$0xff] %v483
      %566 = vst [vmem:[%s194 + $0x80] sm:$0xff] %v488
      %567 = vst [vmem:[%s194 + $0x88] sm:$0xff] %v491
      %568 = vst [vmem:[%s194 + $0x90] sm:$0xff] %v496
      %569 = vst [vmem:[%s194 + $0x98] sm:$0xff] %v499
      %570 = vst [vmem:[%s194 + $0xa0] sm:$0xff] %v504
      %571 = vst [vmem:[%s194 + $0xa8] sm:$0xff] %v507
      %572 = vst [vmem:[%s194 + $0xb0] sm:$0xff] %v512
      %573 = vst [vmem:[%s194 + $0xb8] sm:$0xff] %v515
      %574 = vst [vmem:[%s194 + $0xc0] sm:$0xff] %v520
      %575 = vst [vmem:[%s194 + $0xc8] sm:$0xff] %v523
      %576 = vst [vmem:[%s194 + $0xd0] sm:$0xff] %v528
      %577 = vst [vmem:[%s194 + $0xd8] sm:$0xff] %v531
      %578 = vst [vmem:[%s194 + $0xe0] sm:$0xff] %v536
      %579 = vst [vmem:[%s194 + $0xe8] sm:$0xff] %v539
      %580 = vst [vmem:[%s194 + $0xf0] sm:$0xff] %v544
      %581 = vst [vmem:[%s194 + $0xf8] sm:$0xff] %v547
      %p582 = scmp.eq.s32.totalorder %s16, 0
      // Predicated region
      $region29: #{residual_block_forward.4} parent=27 // pred_check
        %p583 = pneg %p582
      $region30: #{residual_block_forward.4} parent=27 // pred_check_branch
        %585 = sbr.rel (%p583) target = $region32
      $region31: #{residual_block_forward.4} parent=27 // pred_region
        %586 = vst [vmem:[%s3] sm:$0x1] 0.0
        %587 = vst [vmem:[%s4] sm:$0x1] 0.0
      $region32: #{residual_block_forward.4} parent=27 // pred_fallthru
        _
      %v588 = vld [vmem:[%s3] sm:$0x1]
      %v589 = vadd.f32 %v424, %v427
      %v590 = vadd.f32 %v589, %v432
      %v591 = vadd.f32 %v590, %v435
      %v592 = vadd.f32 %v591, %v440
      %v593 = vadd.f32 %v592, %v443
      %v594 = vadd.f32 %v593, %v448
      %v595 = vadd.f32 %v594, %v451
      %v596 = vadd.f32 %v595, %v456
      %v597 = vadd.f32 %v596, %v459
      %v598 = vadd.f32 %v597, %v464
      %v599 = vadd.f32 %v598, %v467
      %v600 = vadd.f32 %v599, %v472
      %v601 = vadd.f32 %v600, %v475
      %v602 = vadd.f32 %v601, %v480
      %v603 = vadd.f32 %v602, %v483
      %v604 = vadd.f32 %v603, %v488
      %v605 = vadd.f32 %v604, %v491
      %v606 = vadd.f32 %v605, %v496
      %v607 = vadd.f32 %v606, %v499
      %v608 = vadd.f32 %v607, %v504
      %v609 = vadd.f32 %v608, %v507
      %v610 = vadd.f32 %v609, %v512
      %v611 = vadd.f32 %v610, %v515
      %v612 = vadd.f32 %v611, %v520
      %v613 = vadd.f32 %v612, %v523
      %v614 = vadd.f32 %v613, %v528
      %v615 = vadd.f32 %v614, %v531
      %v616 = vadd.f32 %v615, %v536
      %v617 = vadd.f32 %v616, %v539
      %v618 = vadd.f32 %v617, %v544
      %v619 = vadd.f32 %v618, %v547
      %v620 = vrot.slane %v619, 4
      %v621 = vadd.f32 %v619, %v620
      %v622 = vrot.slane %v621, 2
      %v623 = vadd.f32 %v621, %v622
      %v624 = vrot.slane %v623, 1
      %v625 = vadd.f32 %v623, %v624
      %v626 = vadd.f32 %v588, %v625
      %627 = vst [vmem:[%s3] sm:$0x1] %v626
      %v628 = vld [vmem:[%s4] sm:$0x1]
      %v629 = vmul.f32 %v424, %v424
      %v630 = vmul.f32 %v427, %v427
      %v631 = vmul.f32 %v432, %v432
      %v632 = vmul.f32 %v435, %v435
      %v633 = vmul.f32 %v440, %v440
      %v634 = vmul.f32 %v443, %v443
      %v635 = vmul.f32 %v448, %v448
      %v636 = vmul.f32 %v451, %v451
      %v637 = vmul.f32 %v456, %v456
      %v638 = vmul.f32 %v459, %v459
      %v639 = vmul.f32 %v464, %v464
      %v640 = vmul.f32 %v467, %v467
      %v641 = vmul.f32 %v472, %v472
      %v642 = vmul.f32 %v475, %v475
      %v643 = vmul.f32 %v480, %v480
      %v644 = vmul.f32 %v483, %v483
      %v645 = vmul.f32 %v488, %v488
      %v646 = vmul.f32 %v491, %v491
      %v647 = vmul.f32 %v496, %v496
      %v648 = vmul.f32 %v499, %v499
      %v649 = vmul.f32 %v504, %v504
      %v650 = vmul.f32 %v507, %v507
      %v651 = vmul.f32 %v512, %v512
      %v652 = vmul.f32 %v515, %v515
      %v653 = vmul.f32 %v520, %v520
      %v654 = vmul.f32 %v523, %v523
      %v655 = vmul.f32 %v528, %v528
      %v656 = vmul.f32 %v531, %v531
      %v657 = vmul.f32 %v536, %v536
      %v658 = vmul.f32 %v539, %v539
      %v659 = vmul.f32 %v544, %v544
      %v660 = vmul.f32 %v547, %v547
      %v661 = vadd.f32 %v629, %v630
      %v662 = vadd.f32 %v661, %v631
      %v663 = vadd.f32 %v662, %v632
      %v664 = vadd.f32 %v663, %v633
      %v665 = vadd.f32 %v664, %v634
      %v666 = vadd.f32 %v665, %v635
      %v667 = vadd.f32 %v666, %v636
      %v668 = vadd.f32 %v667, %v637
      %v669 = vadd.f32 %v668, %v638
      %v670 = vadd.f32 %v669, %v639
      %v671 = vadd.f32 %v670, %v640
      %v672 = vadd.f32 %v671, %v641
      %v673 = vadd.f32 %v672, %v642
      %v674 = vadd.f32 %v673, %v643
      %v675 = vadd.f32 %v674, %v644
      %v676 = vadd.f32 %v675, %v645
      %v677 = vadd.f32 %v676, %v646
      %v678 = vadd.f32 %v677, %v647
      %v679 = vadd.f32 %v678, %v648
      %v680 = vadd.f32 %v679, %v649
      %v681 = vadd.f32 %v680, %v650
      %v682 = vadd.f32 %v681, %v651
      %v683 = vadd.f32 %v682, %v652
      %v684 = vadd.f32 %v683, %v653
      %v685 = vadd.f32 %v684, %v654
      %v686 = vadd.f32 %v685, %v655
      %v687 = vadd.f32 %v686, %v656
      %v688 = vadd.f32 %v687, %v657
      %v689 = vadd.f32 %v688, %v658
      %v690 = vadd.f32 %v689, %v659
      %v691 = vadd.f32 %v690, %v660
      %v692 = vrot.slane %v691, 4
      %v693 = vadd.f32 %v691, %v692
      %v694 = vrot.slane %v693, 2
      %v695 = vadd.f32 %v693, %v694
      %v696 = vrot.slane %v695, 1
      %v697 = vadd.f32 %v695, %v696
      %v698 = vadd.f32 %v628, %v697
      %699 = vst [vmem:[%s4] sm:$0x1] %v698
      %s700 = smul.u32 32, %s16
      %p701 = scmp.lt.s32.totalorder %s700, 63
      %s702 = scalar_select %p701, %s700, 63
      %s703 = smul.addr %s702, 8
      %s704 = scalar_lea.vmem %s2, %s703
      // Predicated region
      $region33: #{residual_block_forward.4} parent=27 // pred_check
        %p705 = pneg %p81
      $region34: #{residual_block_forward.4} parent=27 // pred_check_branch
        %707 = sbr.rel (%p705) target = $region36
      $region35: #{residual_block_forward.4} parent=27 // pred_region
        %s708 = smul.u32 32, %s16
      $region36: #{residual_block_forward.4} parent=27 // pred_fallthru
        _
      // Predicated region
      $region37: #{residual_block_forward.4} parent=27 // pred_check
        %p709 = pneg %p102
      $region38: #{residual_block_forward.4} parent=27 // pred_check_branch
        %711 = sbr.rel (%p709) target = $region40
      $region39: #{residual_block_forward.4} parent=27 // pred_region
        _
      $region40: #{residual_block_forward.4} parent=27 // pred_fallthru
        _
      // Predicated region
      $region41: #{residual_block_forward.4} parent=27 // pred_check
        %p712 = pneg %p123
      $region42: #{residual_block_forward.4} parent=27 // pred_check_branch
        %714 = sbr.rel (%p712) target = $region44
      $region43: #{residual_block_forward.4} parent=27 // pred_region
        _
      $region44: #{residual_block_forward.4} parent=27 // pred_fallthru
        _
      // Predicated region
      $region45: #{residual_block_forward.4} parent=27 // pred_check
        %p715 = pneg %p102
      $region46: #{residual_block_forward.4} parent=27 // pred_check_branch
        %717 = sbr.rel (%p715) target = $region48
      $region47: #{residual_block_forward.4} parent=27 // pred_region
        _
      $region48: #{residual_block_forward.4} parent=27 // pred_fallthru
        _
      // Predicated region
      $region49: #{residual_block_forward.4} parent=27 // pred_check
        %p718 = pneg %p123
      $region50: #{residual_block_forward.4} parent=27 // pred_check_branch
        %720 = sbr.rel (%p718) target = $region52
      $region51: #{residual_block_forward.4} parent=27 // pred_region
        _
      $region52: #{residual_block_forward.4} parent=27 // pred_fallthru
        _
    $region28: #{residual_block_forward.4} parent=5 // pred_fallthru
      _
    %p721 = scmp.le.s32.totalorder 2, %s11
    // Predicated region
    $region53: #{residual_block_forward.4} parent=5 // pred_check
      %p722 = pneg %p721
    $region54: #{residual_block_forward.4} parent=5 // pred_check_branch
      %724 = sbr.rel (%p722) target = $region56
    $region55: #{residual_block_forward.4} parent=5 // pred_region
      %s725 = ssub.s32 %s11, 2
      // Predicated region
      $region57: #{residual_block_forward.4} parent=55 // pred_check
        %p726 = pneg %p87
      $region58: #{residual_block_forward.4} parent=55 // pred_check_branch
        %728 = sbr.rel (%p726) target = $region60
      $region59: #{residual_block_forward.4} parent=55 // pred_region
        %s729 = smul.u32 32, %s17
        %p730 = scmp.lt.s32.totalorder %s729, 63
        %s731 = scalar_select %p730, %s729, 63
        %s732 = smul.addr %s731, 8
        %s733 = scalar_lea.vmem %s2, %s732
      $region60: #{residual_block_forward.4} parent=55 // pred_fallthru
        _
    $region56: #{residual_block_forward.4} parent=5 // pred_fallthru
      _
  $region6: #{residual_block_forward.4} parent=0 // loop_footer
    %s15 = sadd.s32 1, %s11
  $region7: #{residual_block_forward.4} parent=0 // loop_footer_branch
    %10 = sbr.rel target = $region3
  $region8: #{residual_block_forward.4} parent=0 // loop_exit
    _

// kernel: residual_block_forward.7
$region0: #{residual_block_forward.7}
  #allocation0 [shape = 'u32[]', space=smem, size = 0x4, offset = 0x4, fixed_abs, tag = 'smem constant byte address 0x4 - core index']
  #allocation1 [shape = 'u32[144,128]{1,0:T(1,128)}', space=vmem, size = 0x12000, scoped, tag = 'internal scratch']
  %s0 = inlined_call_operand.vmem [shape: f32[512,128], index: 0, kind: input, shape index: {}]
  %s1 = inlined_call_operand.vmem [shape: bf16[512,128], index: 1, kind: input, shape index: {}]
  %s2 = inlined_call_operand.vmem [shape: bf16[128,128], index: 2, kind: input, shape index: {}]
  %s3 = inlined_call_operand.vmem [shape: f32[1,128], index: 3, kind: input, shape index: {}]
  %s4 = inlined_call_operand.vmem [shape: f32[1,128], index: 4, kind: input, shape index: {}]
  %s5 = inlined_call_operand.vmem [shape: f32[1,128], index: 5, kind: input, shape index: {}]
  %s6 = inlined_call_operand.vmem [shape: f32[512,128], index: 6, kind: output, shape index: {}]
  %s7 = sld [smem:[#allocation0]]
  $region57: #{residual_block_forward.7} parent=0
    _
  %s9 = ssub.s32 1, %s7
  %s10 = scalar_select 0, %s9, %s7
  loop: start=0, step=1, limit=4
  $region2: #{residual_block_forward.7} parent=0 // loop_pre_header
    _
  $region3: #{residual_block_forward.7} parent=0 // loop_header
    %s12 = sphi 0, %s16
    %p13 = scmp.ge.s32.totalorder %s12, 4
    %s22 = sphi 0, %s24
    %s25 = sphi 0, %s22
    %s26 = sphi 0, %s25
    %s42 = sphi 0, %s26
    %s48 = sphi 0, %s50
    %s51 = sphi 0, %s48
    %s52 = sphi 0, %s51
    %s68 = sphi 0, %s52
    %s72 = sphi 0, %s72
    %s74 = sphi 0, %s72
    %s75 = sphi 0, %s74
    %s89 = sphi 0, %s75
    %s93 = sphi 0, %s93
    %s95 = sphi 0, %s93
    %s96 = sphi 0, %s95
    %s110 = sphi 0, %s96
    %s114 = sphi 0, %s114
    %s116 = sphi 0, %s114
    %s117 = sphi 0, %s116
    %s131 = sphi 0, %s117
    %s135 = sphi 0, %s135
    %s137 = sphi 0, %s135
    %s138 = sphi 0, %s137
    %s152 = sphi 0, %s138
    %s158 = sphi 0, %s160
    %s161 = sphi 0, %s158
    %s162 = sphi 0, %s161
    %s178 = sphi 0, %s162
  $region4: #{residual_block_forward.7} parent=0 // loop_header_branch
    %15 = sbr.rel (%p13) target = $region8
  $region5: #{residual_block_forward.7} parent=0 // loop_body
    %s17 = ssub.s32 %s12, 1
    %s18 = ssub.s32 %s12, 2
    %s19 = sadd.s32 %s12, 1
    %s20 = ssub.s32 %s12, %s19
    %p21 = scmp.eq.s32.totalorder %s20, 0
    %s23 = sadd.s32 %s22, 1
    %s24 = scalar_select %p21, %s22, %s23
    %p27 = pneg %p21
    %p28 = scmp.eq.s32.totalorder %s12, 1
    %p29 = por %p27, %p28
    %p30 = scmp.ne.s32.totalorder %s22, %s25
    %p31 = scmp.eq.s32.totalorder %s12, 0
    %p32 = por %p30, %p31
    %p33 = scmp.ne.s32.totalorder %s22, %s25
    %p34 = scmp.eq.s32.totalorder %s17, 1
    %p35 = por %p33, %p34
    %p36 = scmp.ne.s32.totalorder %s25, %s26
    %p37 = scmp.eq.s32.totalorder %s17, 0
    %p38 = por %p36, %p37
    %p39 = scmp.ne.s32.totalorder %s25, %s26
    %p40 = scmp.eq.s32.totalorder %s18, 1
    %p41 = por %p39, %p40
    %p43 = scmp.ne.s32.totalorder %s26, %s42
    %p44 = scmp.eq.s32.totalorder %s18, 0
    %p45 = por %p43, %p44
    %s46 = ssub.s32 %s12, %s19
    %p47 = scmp.eq.s32.totalorder %s46, 0
    %s49 = sadd.s32 %s48, 1
    %s50 = scalar_select %p47, %s48, %s49
    %p53 = pneg %p47
    %p54 = scmp.eq.s32.totalorder %s12, 1
    %p55 = por %p53, %p54
    %p56 = scmp.ne.s32.totalorder %s48, %s51
    %p57 = scmp.eq.s32.totalorder %s12, 0
    %p58 = por %p56, %p57
    %p59 = scmp.ne.s32.totalorder %s48, %s51
    %p60 = scmp.eq.s32.totalorder %s17, 1
    %p61 = por %p59, %p60
    %p62 = scmp.ne.s32.totalorder %s51, %s52
    %p63 = scmp.eq.s32.totalorder %s17, 0
    %p64 = por %p62, %p63
    %p65 = scmp.ne.s32.totalorder %s51, %s52
    %p66 = scmp.eq.s32.totalorder %s18, 1
    %p67 = por %p65, %p66
    %p69 = scmp.ne.s32.totalorder %s52, %s68
    %p70 = scmp.eq.s32.totalorder %s18, 0
    %p71 = por %p69, %p70
    %s73 = sadd.s32 %s72, 1
    %p76 = scmp.eq.s32.totalorder %s12, 1
    %p77 = scmp.ne.s32.totalorder %s72, %s74
    %p78 = scmp.eq.s32.totalorder %s12, 0
    %p79 = por %p77, %p78
    %p80 = scmp.ne.s32.totalorder %s72, %s74
    %p81 = scmp.eq.s32.totalorder %s17, 1
    %p82 = por %p80, %p81
    %p83 = scmp.ne.s32.totalorder %s74, %s75
    %p84 = scmp.eq.s32.totalorder %s17, 0
    %p85 = por %p83, %p84
    %p86 = scmp.ne.s32.totalorder %s74, %s75
    %p87 = scmp.eq.s32.totalorder %s18, 1
    %p88 = por %p86, %p87
    %p90 = scmp.ne.s32.totalorder %s75, %s89
    %p91 = scmp.eq.s32.totalorder %s18, 0
    %p92 = por %p90, %p91
    %s94 = sadd.s32 %s93, 1
    %p97 = scmp.eq.s32.totalorder %s12, 1
    %p98 = scmp.ne.s32.totalorder %s93, %s95
    %p99 = scmp.eq.s32.totalorder %s12, 0
    %p100 = por %p98, %p99
    %p101 = scmp.ne.s32.totalorder %s93, %s95
    %p102 = scmp.eq.s32.totalorder %s17, 1
    %p103 = por %p101, %p102
    %p104 = scmp.ne.s32.totalorder %s95, %s96
    %p105 = scmp.eq.s32.totalorder %s17, 0
    %p106 = por %p104, %p105
    %p107 = scmp.ne.s32.totalorder %s95, %s96
    %p108 = scmp.eq.s32.totalorder %s18, 1
    %p109 = por %p107, %p108
    %p111 = scmp.ne.s32.totalorder %s96, %s110
    %p112 = scmp.eq.s32.totalorder %s18, 0
    %p113 = por %p111, %p112
    %s115 = sadd.s32 %s114, 1
    %p118 = scmp.eq.s32.totalorder %s12, 1
    %p119 = scmp.ne.s32.totalorder %s114, %s116
    %p120 = scmp.eq.s32.totalorder %s12, 0
    %p121 = por %p119, %p120
    %p122 = scmp.ne.s32.totalorder %s114, %s116
    %p123 = scmp.eq.s32.totalorder %s17, 1
    %p124 = por %p122, %p123
    %p125 = scmp.ne.s32.totalorder %s116, %s117
    %p126 = scmp.eq.s32.totalorder %s17, 0
    %p127 = por %p125, %p126
    %p128 = scmp.ne.s32.totalorder %s116, %s117
    %p129 = scmp.eq.s32.totalorder %s18, 1
    %p130 = por %p128, %p129
    %p132 = scmp.ne.s32.totalorder %s117, %s131
    %p133 = scmp.eq.s32.totalorder %s18, 0
    %p134 = por %p132, %p133
    %s136 = sadd.s32 %s135, 1
    %p139 = scmp.eq.s32.totalorder %s12, 1
    %p140 = scmp.ne.s32.totalorder %s135, %s137
    %p141 = scmp.eq.s32.totalorder %s12, 0
    %p142 = por %p140, %p141
    %p143 = scmp.ne.s32.totalorder %s135, %s137
    %p144 = scmp.eq.s32.totalorder %s17, 1
    %p145 = por %p143, %p144
    %p146 = scmp.ne.s32.totalorder %s137, %s138
    %p147 = scmp.eq.s32.totalorder %s17, 0
    %p148 = por %p146, %p147
    %p149 = scmp.ne.s32.totalorder %s137, %s138
    %p150 = scmp.eq.s32.totalorder %s18, 1
    %p151 = por %p149, %p150
    %p153 = scmp.ne.s32.totalorder %s138, %s152
    %p154 = scmp.eq.s32.totalorder %s18, 0
    %p155 = por %p153, %p154
    %s156 = ssub.s32 %s12, %s19
    %p157 = scmp.eq.s32.totalorder %s156, 0
    %s159 = sadd.s32 %s158, 1
    %s160 = scalar_select %p157, %s158, %s159
    %p163 = pneg %p157
    %p164 = scmp.eq.s32.totalorder %s12, 1
    %p165 = por %p163, %p164
    %p166 = scmp.ne.s32.totalorder %s158, %s161
    %p167 = scmp.eq.s32.totalorder %s12, 0
    %p168 = por %p166, %p167
    %p169 = scmp.ne.s32.totalorder %s158, %s161
    %p170 = scmp.eq.s32.totalorder %s17, 1
    %p171 = por %p169, %p170
    %p172 = scmp.ne.s32.totalorder %s161, %s162
    %p173 = scmp.eq.s32.totalorder %s17, 0
    %p174 = por %p172, %p173
    %p175 = scmp.ne.s32.totalorder %s161, %s162
    %p176 = scmp.eq.s32.totalorder %s18, 1
    %p177 = por %p175, %p176
    %p179 = scmp.ne.s32.totalorder %s162, %s178
    %p180 = scmp.eq.s32.totalorder %s18, 0
    %p181 = por %p179, %p180
    %p182 = scmp.le.s32.totalorder 1, %s12
    %p183 = scmp.lt.s32.totalorder %s12, 3
    %p184 = pnand %p182, %p183
    %p185 = pneg %p184
    // Predicated region
    $region9: #{residual_block_forward.7} parent=5 // pred_check
      _
    $region10: #{residual_block_forward.7} parent=5 // pred_check_branch
      %187 = sbr.rel (%p184) target = $region12
    $region11: #{residual_block_forward.7} parent=5 // pred_region
      %s188 = ssub.s32 %s12, 1
      // Predicated region
      $region13: #{residual_block_forward.7} parent=11 // pred_check
        %p189 = pneg %p85
      $region14: #{residual_block_forward.7} parent=11 // pred_check_branch
        %191 = sbr.rel (%p189) target = $region16
      $region15: #{residual_block_forward.7} parent=11 // pred_region
        _
      $region16: #{residual_block_forward.7} parent=11 // pred_fallthru
        _
      // Predicated region
      $region17: #{residual_block_forward.7} parent=11 // pred_check
        %p192 = pneg %p106
      $region18: #{residual_block_forward.7} parent=11 // pred_check_branch
        %194 = sbr.rel (%p192) target = $region20
      $region19: #{residual_block_forward.7} parent=11 // pred_region
        _
      $region20: #{residual_block_forward.7} parent=11 // pred_fallthru
        _
      // Predicated region
      $region21: #{residual_block_forward.7} parent=11 // pred_check
        %p195 = pneg %p127
      $region22: #{residual_block_forward.7} parent=11 // pred_check_branch
        %197 = sbr.rel (%p195) target = $region24
      $region23: #{residual_block_forward.7} parent=11 // pred_region
        _
      $region24: #{residual_block_forward.7} parent=11 // pred_fallthru
        _
      // Predicated region
      $region25: #{residual_block_forward.7} parent=11 // pred_check
        %p198 = pneg %p148
      $region26: #{residual_block_forward.7} parent=11 // pred_check_branch
        %200 = sbr.rel (%p198) target = $region28
      $region27: #{residual_block_forward.7} parent=11 // pred_region
        _
      $region28: #{residual_block_forward.7} parent=11 // pred_fallthru
        _
    $region12: #{residual_block_forward.7} parent=5 // pred_fallthru
      _
    %p201 = scmp.lt.s32.totalorder %s12, 2
    // Predicated region
    $region29: #{residual_block_forward.7} parent=5 // pred_check
      %p202 = pneg %p201
    $region30: #{residual_block_forward.7} parent=5 // pred_check_branch
      %204 = sbr.rel (%p202) target = $region32
    $region31: #{residual_block_forward.7} parent=5 // pred_region
      // Predicated region
      $region33: #{residual_block_forward.7} parent=31 // pred_check
        %p205 = pneg %p32
      $region34: #{residual_block_forward.7} parent=31 // pred_check_branch
        %207 = sbr.rel (%p205) target = $region36
      $region35: #{residual_block_forward.7} parent=31 // pred_region
        %s208 = smul.u32 32, %s12
        %p209 = scmp.lt.s32.totalorder %s208, 63
        %s210 = scalar_select %p209, %s208, 63
        %s211 = smul.addr %s210, 8
        %s212 = scalar_lea.vmem %s0, %s211
        %s213 = smul.u32 32, %s12
      $region36: #{residual_block_forward.7} parent=31 // pred_fallthru
        _
      // Predicated region
      $region37: #{residual_block_forward.7} parent=31 // pred_check
        %p214 = pneg %p58
      $region38: #{residual_block_forward.7} parent=31 // pred_check_branch
        %216 = sbr.rel (%p214) target = $region40
      $region39: #{residual_block_forward.7} parent=31 // pred_region
        %s217 = smul.u32 32, %s12
        %p218 = scmp.lt.s32.totalorder %s217, 63
        %s219 = scalar_select %p218, %s217, 63
        %s220 = smul.addr %s219, 4
        %s221 = scalar_lea.vmem %s1, %s220
        %s222 = smul.u32 32, %s12
      $region40: #{residual_block_forward.7} parent=31 // pred_fallthru
        _
    $region32: #{residual_block_forward.7} parent=5 // pred_fallthru
      _
    %p223 = scmp.le.s32.totalorder 1, %s12
    %p224 = scmp.lt.s32.totalorder %s12, 3
    %p225 = pnand %p223, %p224
    %p226 = pneg %p225
    // Predicated region
    $region41: #{residual_block_forward.7} parent=5 // pred_check
      _
    $region42: #{residual_block_forward.7} parent=5 // pred_check_branch
      %228 = sbr.rel (%p225) target = $region44
    $region43: #{residual_block_forward.7} parent=5 // pred_region
      %s229 = ssub.s32 %s12, 1
      %s230 = smul.u32 32, %s17
      %p231 = scmp.lt.s32.totalorder %s230, 63
      %s232 = scalar_select %p231, %s230, 63
      %s233 = smul.addr %s232, 8
      %s234 = scalar_lea.vmem %s0, %s233
      %p235 = pneg %p38
      %p236 = pneg %p35
      %s237 = smul.u32 32, %s17
      %p238 = scmp.lt.s32.totalorder %s237, 63
      %s239 = scalar_select %p238, %s237, 63
      %s240 = smul.addr %s239, 4
      %s241 = scalar_lea.vmem %s1, %s240
      %p242 = pneg %p64
      %p243 = pneg %p61
      %p244 = pneg %p85
      %p245 = pneg %p82
      %p246 = pneg %p106
      %p247 = pneg %p103
      %p248 = pneg %p127
      %p249 = pneg %p124
      %p250 = pneg %p148
      %p251 = pneg %p145
      %p252 = pneg %p174
      %p253 = pneg %p171
      %s254 = smul.u32 32, %s17
      %p255 = scmp.lt.s32.totalorder %s254, 63
      %s256 = scalar_select %p255, %s254, 63
      %s257 = smul.addr %s256, 8
      %s258 = scalar_lea.vmem %s6, %s257
      %s259 = smul.u32 32, %s17
      %p260 = scmp.lt.s32.totalorder %s259, 63
      %s261 = scalar_select %p260, %s259, 63
      %s262 = smul.addr %s261, 8
      %s263 = scalar_lea.vmem %s0, %s262
      %s264 = smul.u32 32, %s17
      %s265 = smul.u32 32, %s17
      %p266 = scmp.lt.s32.totalorder %s265, 63
      %s267 = scalar_select %p266, %s265, 63
      %s268 = smul.addr %s267, 4
      %s269 = scalar_lea.vmem %s1, %s268
      %s270 = smul.u32 32, %s17
      %s271 = smul.u32 32, %s17
      %p272 = scmp.lt.s32.totalorder %s271, 63
      %s273 = scalar_select %p272, %s271, 63
      %s274 = smul.addr %s273, 8
      %s275 = scalar_lea.vmem %s6, %s274
      %s276 = smul.u32 32, %s17
      %v278 = vld [vmem:[%s269] sm:$0xf]
      %v279 = vld [vmem:[%s269 + $0x4] sm:$0xf]
      %v280 = vld [vmem:[%s269 + $0x8] sm:$0xf]
      %v281 = vld [vmem:[%s269 + $0xc] sm:$0xf]
      %v282 = vld [vmem:[%s269 + $0x10] sm:$0xf]
      %v283 = vld [vmem:[%s269 + $0x14] sm:$0xf]
      %v284 = vld [vmem:[%s269 + $0x18] sm:$0xf]
      %v285 = vld [vmem:[%s269 + $0x1c] sm:$0xf]
      %v286 = vld [vmem:[%s269 + $0x20] sm:$0xf]
      %v287 = vld [vmem:[%s269 + $0x24] sm:$0xf]
      %v288 = vld [vmem:[%s269 + $0x28] sm:$0xf]
      %v289 = vld [vmem:[%s269 + $0x2c] sm:$0xf]
      %v290 = vld [vmem:[%s269 + $0x30] sm:$0xf]
      %v291 = vld [vmem:[%s269 + $0x34] sm:$0xf]
      %v292 = vld [vmem:[%s269 + $0x38] sm:$0xf]
      %v293 = vld [vmem:[%s269 + $0x3c] sm:$0xf]
      %v294 = vld [vmem:[%s269 + $0x40] sm:$0xf]
      %v295 = vld [vmem:[%s269 + $0x44] sm:$0xf]
      %v296 = vld [vmem:[%s269 + $0x48] sm:$0xf]
      %v297 = vld [vmem:[%s269 + $0x4c] sm:$0xf]
      %v298 = vld [vmem:[%s269 + $0x50] sm:$0xf]
      %v299 = vld [vmem:[%s269 + $0x54] sm:$0xf]
      %v300 = vld [vmem:[%s269 + $0x58] sm:$0xf]
      %v301 = vld [vmem:[%s269 + $0x5c] sm:$0xf]
      %v302 = vld [vmem:[%s269 + $0x60] sm:$0xf]
      %v303 = vld [vmem:[%s269 + $0x64] sm:$0xf]
      %v304 = vld [vmem:[%s269 + $0x68] sm:$0xf]
      %v305 = vld [vmem:[%s269 + $0x6c] sm:$0xf]
      %v306 = vld [vmem:[%s269 + $0x70] sm:$0xf]
      %v307 = vld [vmem:[%s269 + $0x74] sm:$0xf]
      %v308 = vld [vmem:[%s269 + $0x78] sm:$0xf]
      %v309 = vld [vmem:[%s269 + $0x7c] sm:$0xf]
      %v310 = vld [vmem:[%s2] sm:$0xf]
      %v311 = vld [vmem:[%s2 + $0x4] sm:$0xf]
      %v312 = vld [vmem:[%s2 + $0x8] sm:$0xf]
      %v313 = vld [vmem:[%s2 + $0xc] sm:$0xf]
      %v314 = vld [vmem:[%s2 + $0x10] sm:$0xf]
      %v315 = vld [vmem:[%s2 + $0x14] sm:$0xf]
      %v316 = vld [vmem:[%s2 + $0x18] sm:$0xf]
      %v317 = vld [vmem:[%s2 + $0x1c] sm:$0xf]
      %v318 = vld [vmem:[%s2 + $0x20] sm:$0xf]
      %v319 = vld [vmem:[%s2 + $0x24] sm:$0xf]
      %v320 = vld [vmem:[%s2 + $0x28] sm:$0xf]
      %v321 = vld [vmem:[%s2 + $0x2c] sm:$0xf]
      %v322 = vld [vmem:[%s2 + $0x30] sm:$0xf]
      %v323 = vld [vmem:[%s2 + $0x34] sm:$0xf]
      %v324 = vld [vmem:[%s2 + $0x38] sm:$0xf]
      %v325 = vld [vmem:[%s2 + $0x3c] sm:$0xf]
      %v326 = vld [vmem:[%s3] sm:$0x1]
      %v328 = vlaneseq
      %v329 = vshrl.u32 %v328, 7
      %v330 = vsub.s32 0, %v329
      %v331 = vrot.slane %v326, %v330
      %v365 = vunpack.c.l.b16 %v278
      %v366 = vunpack.c.l.b16 %v279
      %v367 = vunpack.c.l.b16 %v280
      %v368 = vunpack.c.l.b16 %v281
      %v369 = vunpack.c.l.b16 %v282
      %v370 = vunpack.c.l.b16 %v283
      %v371 = vunpack.c.l.b16 %v284
      %v372 = vunpack.c.l.b16 %v285
      %v373 = vunpack.c.l.b16 %v286
      %v374 = vunpack.c.l.b16 %v287
      %v375 = vunpack.c.l.b16 %v288
      %v376 = vunpack.c.l.b16 %v289
      %v377 = vunpack.c.l.b16 %v290
      %v378 = vunpack.c.l.b16 %v291
      %v379 = vunpack.c.l.b16 %v292
      %v380 = vunpack.c.l.b16 %v293
      %v381 = vunpack.c.l.b16 %v294
      %v382 = vunpack.c.l.b16 %v295
      %v383 = vunpack.c.l.b16 %v296
      %v384 = vunpack.c.l.b16 %v297
      %v385 = vunpack.c.l.b16 %v298
      %v386 = vunpack.c.l.b16 %v299
      %v387 = vunpack.c.l.b16 %v300
      %v388 = vunpack.c.l.b16 %v301
      %v389 = vunpack.c.l.b16 %v302
      %v390 = vunpack.c.l.b16 %v303
      %v391 = vunpack.c.l.b16 %v304
      %v392 = vunpack.c.l.b16 %v305
      %v393 = vunpack.c.l.b16 %v306
      %v394 = vunpack.c.l.b16 %v307
      %v395 = vunpack.c.l.b16 %v308
      %v396 = vunpack.c.l.b16 %v309
      %v397 = vpack.c.b16 %v366, %v365
      %v398 = vpack.c.b16 %v368, %v367
      %v399 = vpack.c.b16 %v370, %v369
      %v400 = vpack.c.b16 %v372, %v371
      %v401 = vpack.c.b16 %v374, %v373
      %v402 = vpack.c.b16 %v376, %v375
      %v403 = vpack.c.b16 %v378, %v377
      %v404 = vpack.c.b16 %v380, %v379
      %v405 = vpack.c.b16 %v382, %v381
      %v406 = vpack.c.b16 %v384, %v383
      %v407 = vpack.c.b16 %v386, %v385
      %v408 = vpack.c.b16 %v388, %v387
      %v409 = vpack.c.b16 %v390, %v389
      %v410 = vpack.c.b16 %v392, %v391
      %v411 = vpack.c.b16 %v394, %v393
      %v412 = vpack.c.b16 %v396, %v395
      %v445 = vunpack.c.l.b16 %v310
      %v446 = vunpack.c.l.b16 %v311
      %v447 = vunpack.c.l.b16 %v312
      %v448 = vunpack.c.l.b16 %v313
      %v449 = vunpack.c.l.b16 %v314
      %v450 = vunpack.c.l.b16 %v315
      %v451 = vunpack.c.l.b16 %v316
      %v452 = vunpack.c.l.b16 %v317
      %v453 = vunpack.c.l.b16 %v318
      %v454 = vunpack.c.l.b16 %v319
      %v455 = vunpack.c.l.b16 %v320
      %v456 = vunpack.c.l.b16 %v321
      %v457 = vunpack.c.l.b16 %v322
      %v458 = vunpack.c.l.b16 %v323
      %v459 = vunpack.c.l.b16 %v324
      %v460 = vunpack.c.l.b16 %v325
      %v461 = vpack.c.b16 %v446, %v445
      %v462 = vpack.c.b16 %v448, %v447
      %v463 = vpack.c.b16 %v450, %v449
      %v464 = vpack.c.b16 %v452, %v451
      %v465 = vpack.c.b16 %v454, %v453
      %v466 = vpack.c.b16 %v456, %v455
      %v467 = vpack.c.b16 %v458, %v457
      %v468 = vpack.c.b16 %v460, %v459
      %477 = vmatprep.subr.bf16.mxu0 0
      %478 = vmatpush1.bf16.msra.mxu0 %v461
      %479 = vmatprep.subr.bf16.mxu0 0
      %480 = vmatpush1.bf16.msra.mxu0 %v462
      %481 = vmatprep.subr.bf16.mxu0 0
      %482 = vmatpush1.bf16.msra.mxu0 %v463
      %483 = vmatprep.subr.bf16.mxu0 0
      %484 = vmatpush1.bf16.msra.mxu0 %v464
      %485 = vmatprep.subr.bf16.mxu0 0
      %486 = vmatpush1.bf16.msra.mxu0 %v465
      %487 = vmatprep.subr.bf16.mxu0 0
      %488 = vmatpush1.bf16.msra.mxu0 %v466
      %489 = vmatprep.subr.bf16.mxu0 0
      %490 = vmatpush1.bf16.msra.mxu0 %v467
      %491 = vmatprep.subr.bf16.mxu0 0
      %492 = vmatpush1.bf16.msra.mxu0 %v468
      %493 = vmatprep.subr.bf16.mxu0 0
      %494 = vmatpush1.bf16.msra.mxu0 0
      %495 = vmatprep.subr.bf16.mxu0 0
      %496 = vmatpush1.bf16.msra.mxu0 0
      %497 = vmatprep.subr.bf16.mxu0 0
      %498 = vmatpush1.bf16.msra.mxu0 0
      %499 = vmatprep.subr.bf16.mxu0 0
      %500 = vmatpush1.bf16.msra.mxu0 0
      %501 = vmatprep.subr.bf16.mxu0 0
      %502 = vmatpush1.bf16.msra.mxu0 0
      %503 = vmatprep.subr.bf16.mxu0 0
      %504 = vmatpush1.bf16.msra.mxu0 0
      %505 = vmatprep.subr.bf16.mxu0 0
      %506 = vmatpush1.bf16.msra.mxu0 0
      %507 = vmatprep.subr.bf16.mxu0 0
      %508 = vmatpush1.bf16.msra.mxu0 0
      %509 = vmatprep.mubr.bf16.mxu0 0
      %510 = vmatmul.mubr.bf16.gmra.mrb[0].mxu0 %v397
      %v511 = vpop.f32.mrb[0].mxu0
      %v512 = vadd.f32 %v331, %v511
      %v513 = vpop.f32.mrb[0].mxu0
      %v514 = vpop.f32.mrb[0].mxu0
      %v515 = vadd.f32 %v331, %v514
      %v516 = vpop.f32.mrb[0].mxu0
      %517 = vmatprep.mubr.bf16.mxu0 0
      %518 = vmatmul.mubr.bf16.gmra.mrb[0].mxu0 %v398
      %v519 = vpop.f32.mrb[0].mxu0
      %v520 = vadd.f32 %v331, %v519
      %v521 = vpop.f32.mrb[0].mxu0
      %v522 = vpop.f32.mrb[0].mxu0
      %v523 = vadd.f32 %v331, %v522
      %v524 = vpop.f32.mrb[0].mxu0
      %525 = vmatprep.mubr.bf16.mxu0 0
      %526 = vmatmul.mubr.bf16.gmra.mrb[0].mxu0 %v399
      %v527 = vpop.f32.mrb[0].mxu0
      %v528 = vadd.f32 %v331, %v527
      %v529 = vpop.f32.mrb[0].mxu0
      %v530 = vpop.f32.mrb[0].mxu0
      %v531 = vadd.f32 %v331, %v530
      %v532 = vpop.f32.mrb[0].mxu0
      %533 = vmatprep.mubr.bf16.mxu0 0
      %534 = vmatmul.mubr.bf16.gmra.mrb[0].mxu0 %v400
      %v535 = vpop.f32.mrb[0].mxu0
      %v536 = vadd.f32 %v331, %v535
      %v537 = vpop.f32.mrb[0].mxu0
      %v538 = vpop.f32.mrb[0].mxu0
      %v539 = vadd.f32 %v331, %v538
      %v540 = vpop.f32.mrb[0].mxu0
      %541 = vmatprep.mubr.bf16.mxu0 0
      %542 = vmatmul.mubr.bf16.gmra.mrb[0].mxu0 %v401
      %v543 = vpop.f32.mrb[0].mxu0
      %v544 = vadd.f32 %v331, %v543
      %v545 = vpop.f32.mrb[0].mxu0
      %v546 = vpop.f32.mrb[0].mxu0
      %v547 = vadd.f32 %v331, %v546
      %v548 = vpop.f32.mrb[0].mxu0
      %549 = vmatprep.mubr.bf16.mxu0 0
      %550 = vmatmul.mubr.bf16.gmra.mrb[0].mxu0 %v402
      %v551 = vpop.f32.mrb[0].mxu0
      %v552 = vadd.f32 %v331, %v551
      %v553 = vpop.f32.mrb[0].mxu0
      %v554 = vpop.f32.mrb[0].mxu0
      %v555 = vadd.f32 %v331, %v554
      %v556 = vpop.f32.mrb[0].mxu0
      %557 = vmatprep.mubr.bf16.mxu0 0
      %558 = vmatmul.mubr.bf16.gmra.mrb[0].mxu0 %v403
      %v559 = vpop.f32.mrb[0].mxu0
      %v560 = vadd.f32 %v331, %v559
      %v561 = vpop.f32.mrb[0].mxu0
      %v562 = vpop.f32.mrb[0].mxu0
      %v563 = vadd.f32 %v331, %v562
      %v564 = vpop.f32.mrb[0].mxu0
      %565 = vmatprep.mubr.bf16.mxu0 0
      %566 = vmatmul.mubr.bf16.gmra.mrb[0].mxu0 %v404
      %v567 = vpop.f32.mrb[0].mxu0
      %v568 = vadd.f32 %v331, %v567
      %v569 = vpop.f32.mrb[0].mxu0
      %v570 = vpop.f32.mrb[0].mxu0
      %v571 = vadd.f32 %v331, %v570
      %v572 = vpop.f32.mrb[0].mxu0
      %573 = vmatprep.mubr.bf16.mxu0 0
      %574 = vmatmul.mubr.bf16.gmra.mrb[0].mxu0 %v405
      %v575 = vpop.f32.mrb[0].mxu0
      %v576 = vadd.f32 %v331, %v575
      %v577 = vpop.f32.mrb[0].mxu0
      %v578 = vpop.f32.mrb[0].mxu0
      %v579 = vadd.f32 %v331, %v578
      %v580 = vpop.f32.mrb[0].mxu0
      %581 = vmatprep.mubr.bf16.mxu0 0
      %582 = vmatmul.mubr.bf16.gmra.mrb[0].mxu0 %v406
      %v583 = vpop.f32.mrb[0].mxu0
      %v584 = vadd.f32 %v331, %v583
      %v585 = vpop.f32.mrb[0].mxu0
      %v586 = vpop.f32.mrb[0].mxu0
      %v587 = vadd.f32 %v331, %v586
      %v588 = vpop.f32.mrb[0].mxu0
      %589 = vmatprep.mubr.bf16.mxu0 0
      %590 = vmatmul.mubr.bf16.gmra.mrb[0].mxu0 %v407
      %v591 = vpop.f32.mrb[0].mxu0
      %v592 = vadd.f32 %v331, %v591
      %v593 = vpop.f32.mrb[0].mxu0
      %v594 = vpop.f32.mrb[0].mxu0
      %v595 = vadd.f32 %v331, %v594
      %v596 = vpop.f32.mrb[0].mxu0
      %597 = vmatprep.mubr.bf16.mxu0 0
      %598 = vmatmul.mubr.bf16.gmra.mrb[0].mxu0 %v408
      %v599 = vpop.f32.mrb[0].mxu0
      %v600 = vadd.f32 %v331, %v599
      %v601 = vpop.f32.mrb[0].mxu0
      %v602 = vpop.f32.mrb[0].mxu0
      %v603 = vadd.f32 %v331, %v602
      %v604 = vpop.f32.mrb[0].mxu0
      %605 = vmatprep.mubr.bf16.mxu0 0
      %606 = vmatmul.mubr.bf16.gmra.mrb[0].mxu0 %v409
      %v607 = vpop.f32.mrb[0].mxu0
      %v608 = vadd.f32 %v331, %v607
      %v609 = vpop.f32.mrb[0].mxu0
      %v610 = vpop.f32.mrb[0].mxu0
      %v611 = vadd.f32 %v331, %v610
      %v612 = vpop.f32.mrb[0].mxu0
      %613 = vmatprep.mubr.bf16.mxu0 0
      %614 = vmatmul.mubr.bf16.gmra.mrb[0].mxu0 %v410
      %v615 = vpop.f32.mrb[0].mxu0
      %v616 = vadd.f32 %v331, %v615
      %v617 = vpop.f32.mrb[0].mxu0
      %v618 = vpop.f32.mrb[0].mxu0
      %v619 = vadd.f32 %v331, %v618
      %v620 = vpop.f32.mrb[0].mxu0
      %621 = vmatprep.mubr.bf16.mxu0 0
      %622 = vmatmul.mubr.bf16.gmra.mrb[0].mxu0 %v411
      %v623 = vpop.f32.mrb[0].mxu0
      %v624 = vadd.f32 %v331, %v623
      %v625 = vpop.f32.mrb[0].mxu0
      %v626 = vpop.f32.mrb[0].mxu0
      %v627 = vadd.f32 %v331, %v626
      %v628 = vpop.f32.mrb[0].mxu0
      %629 = vmatprep.mubr.bf16.mxu0 0
      %630 = vmatmul.mubr.bf16.gmra.mrb[0].mxu0 %v412
      %v631 = vpop.f32.mrb[0].mxu0
      %v632 = vadd.f32 %v331, %v631
      %v633 = vpop.f32.mrb[0].mxu0
      %v634 = vpop.f32.mrb[0].mxu0
      %v635 = vadd.f32 %v331, %v634
      %v636 = vpop.f32.mrb[0].mxu0
      %637 = vdwg.mxu0
      %v638 = vld [vmem:[%s263] sm:$0xff]
      %v639 = vld [vmem:[%s263 + $0x8] sm:$0xff]
      %v640 = vld [vmem:[%s263 + $0x10] sm:$0xff]
      %v641 = vld [vmem:[%s263 + $0x18] sm:$0xff]
      %v642 = vld [vmem:[%s263 + $0x20] sm:$0xff]
      %v643 = vld [vmem:[%s263 + $0x28] sm:$0xff]
      %v644 = vld [vmem:[%s263 + $0x30] sm:$0xff]
      %v645 = vld [vmem:[%s263 + $0x38] sm:$0xff]
      %v646 = vld [vmem:[%s263 + $0x40] sm:$0xff]
      %v647 = vld [vmem:[%s263 + $0x48] sm:$0xff]
      %v648 = vld [vmem:[%s263 + $0x50] sm:$0xff]
      %v649 = vld [vmem:[%s263 + $0x58] sm:$0xff]
      %v650 = vld [vmem:[%s263 + $0x60] sm:$0xff]
      %v651 = vld [vmem:[%s263 + $0x68] sm:$0xff]
      %v652 = vld [vmem:[%s263 + $0x70] sm:$0xff]
      %v653 = vld [vmem:[%s263 + $0x78] sm:$0xff]
      %v654 = vld [vmem:[%s263 + $0x80] sm:$0xff]
      %v655 = vld [vmem:[%s263 + $0x88] sm:$0xff]
      %v656 = vld [vmem:[%s263 + $0x90] sm:$0xff]
      %v657 = vld [vmem:[%s263 + $0x98] sm:$0xff]
      %v658 = vld [vmem:[%s263 + $0xa0] sm:$0xff]
      %v659 = vld [vmem:[%s263 + $0xa8] sm:$0xff]
      %v660 = vld [vmem:[%s263 + $0xb0] sm:$0xff]
      %v661 = vld [vmem:[%s263 + $0xb8] sm:$0xff]
      %v662 = vld [vmem:[%s263 + $0xc0] sm:$0xff]
      %v663 = vld [vmem:[%s263 + $0xc8] sm:$0xff]
      %v664 = vld [vmem:[%s263 + $0xd0] sm:$0xff]
      %v665 = vld [vmem:[%s263 + $0xd8] sm:$0xff]
      %v666 = vld [vmem:[%s263 + $0xe0] sm:$0xff]
      %v667 = vld [vmem:[%s263 + $0xe8] sm:$0xff]
      %v668 = vld [vmem:[%s263 + $0xf0] sm:$0xff]
      %v669 = vld [vmem:[%s263 + $0xf8] sm:$0xff]
      %v670 = vld [vmem:[%s4] sm:$0x1]
      %v672 = vlaneseq
      %v673 = vshrl.u32 %v672, 7
      %v674 = vsub.s32 0, %v673
      %v675 = vrot.slane %v670, %v674
      %v677 = vmul.f32 %v638, %v675
      %v678 = vmul.f32 %v639, %v675
      %v679 = vmul.f32 %v640, %v675
      %v680 = vmul.f32 %v641, %v675
      %v681 = vmul.f32 %v642, %v675
      %v682 = vmul.f32 %v643, %v675
      %v683 = vmul.f32 %v644, %v675
      %v684 = vmul.f32 %v645, %v675
      %v685 = vmul.f32 %v646, %v675
      %v686 = vmul.f32 %v647, %v675
      %v687 = vmul.f32 %v648, %v675
      %v688 = vmul.f32 %v649, %v675
      %v689 = vmul.f32 %v650, %v675
      %v690 = vmul.f32 %v651, %v675
      %v691 = vmul.f32 %v652, %v675
      %v692 = vmul.f32 %v653, %v675
      %v693 = vmul.f32 %v654, %v675
      %v694 = vmul.f32 %v655, %v675
      %v695 = vmul.f32 %v656, %v675
      %v696 = vmul.f32 %v657, %v675
      %v697 = vmul.f32 %v658, %v675
      %v698 = vmul.f32 %v659, %v675
      %v699 = vmul.f32 %v660, %v675
      %v700 = vmul.f32 %v661, %v675
      %v701 = vmul.f32 %v662, %v675
      %v702 = vmul.f32 %v663, %v675
      %v703 = vmul.f32 %v664, %v675
      %v704 = vmul.f32 %v665, %v675
      %v705 = vmul.f32 %v666, %v675
      %v706 = vmul.f32 %v667, %v675
      %v707 = vmul.f32 %v668, %v675
      %v708 = vmul.f32 %v669, %v675
      %v709 = vld [vmem:[%s5] sm:$0x1]
      %v711 = vlaneseq
      %v712 = vshrl.u32 %v711, 7
      %v713 = vsub.s32 0, %v712
      %v714 = vrot.slane %v709, %v713
      %v716 = vadd.f32 %v677, %v714
      %v717 = vadd.f32 %v678, %v714
      %v718 = vadd.f32 %v679, %v714
      %v719 = vadd.f32 %v680, %v714
      %v720 = vadd.f32 %v681, %v714
      %v721 = vadd.f32 %v682, %v714
      %v722 = vadd.f32 %v683, %v714
      %v723 = vadd.f32 %v684, %v714
      %v724 = vadd.f32 %v685, %v714
      %v725 = vadd.f32 %v686, %v714
      %v726 = vadd.f32 %v687, %v714
      %v727 = vadd.f32 %v688, %v714
      %v728 = vadd.f32 %v689, %v714
      %v729 = vadd.f32 %v690, %v714
      %v730 = vadd.f32 %v691, %v714
      %v731 = vadd.f32 %v692, %v714
      %v732 = vadd.f32 %v693, %v714
      %v733 = vadd.f32 %v694, %v714
      %v734 = vadd.f32 %v695, %v714
      %v735 = vadd.f32 %v696, %v714
      %v736 = vadd.f32 %v697, %v714
      %v737 = vadd.f32 %v698, %v714
      %v738 = vadd.f32 %v699, %v714
      %v739 = vadd.f32 %v700, %v714
      %v740 = vadd.f32 %v701, %v714
      %v741 = vadd.f32 %v702, %v714
      %v742 = vadd.f32 %v703, %v714
      %v743 = vadd.f32 %v704, %v714
      %v744 = vadd.f32 %v705, %v714
      %v745 = vadd.f32 %v706, %v714
      %v746 = vadd.f32 %v707, %v714
      %v747 = vadd.f32 %v708, %v714
      %v748 = vadd.f32 %v716, %v512
      %v749 = vadd.f32 %v717, %v515
      %v750 = vadd.f32 %v718, %v520
      %v751 = vadd.f32 %v719, %v523
      %v752 = vadd.f32 %v720, %v528
      %v753 = vadd.f32 %v721, %v531
      %v754 = vadd.f32 %v722, %v536
      %v755 = vadd.f32 %v723, %v539
      %v756 = vadd.f32 %v724, %v544
      %v757 = vadd.f32 %v725, %v547
      %v758 = vadd.f32 %v726, %v552
      %v759 = vadd.f32 %v727, %v555
      %v760 = vadd.f32 %v728, %v560
      %v761 = vadd.f32 %v729, %v563
      %v762 = vadd.f32 %v730, %v568
      %v763 = vadd.f32 %v731, %v571
      %v764 = vadd.f32 %v732, %v576
      %v765 = vadd.f32 %v733, %v579
      %v766 = vadd.f32 %v734, %v584
      %v767 = vadd.f32 %v735, %v587
      %v768 = vadd.f32 %v736, %v592
      %v769 = vadd.f32 %v737, %v595
      %v770 = vadd.f32 %v738, %v600
      %v771 = vadd.f32 %v739, %v603
      %v772 = vadd.f32 %v740, %v608
      %v773 = vadd.f32 %v741, %v611
      %v774 = vadd.f32 %v742, %v616
      %v775 = vadd.f32 %v743, %v619
      %v776 = vadd.f32 %v744, %v624
      %v777 = vadd.f32 %v745, %v627
      %v778 = vadd.f32 %v746, %v632
      %v779 = vadd.f32 %v747, %v635
      %v780 = vmax.f32 %v748, 0.0
      %v781 = vmax.f32 %v749, 0.0
      %v782 = vmax.f32 %v750, 0.0
      %v783 = vmax.f32 %v751, 0.0
      %v784 = vmax.f32 %v752, 0.0
      %v785 = vmax.f32 %v753, 0.0
      %v786 = vmax.f32 %v754, 0.0
      %v787 = vmax.f32 %v755, 0.0
      %v788 = vmax.f32 %v756, 0.0
      %v789 = vmax.f32 %v757, 0.0
      %v790 = vmax.f32 %v758, 0.0
      %v791 = vmax.f32 %v759, 0.0
      %v792 = vmax.f32 %v760, 0.0
      %v793 = vmax.f32 %v761, 0.0
      %v794 = vmax.f32 %v762, 0.0
      %v795 = vmax.f32 %v763, 0.0
      %v796 = vmax.f32 %v764, 0.0
      %v797 = vmax.f32 %v765, 0.0
      %v798 = vmax.f32 %v766, 0.0
      %v799 = vmax.f32 %v767, 0.0
      %v800 = vmax.f32 %v768, 0.0
      %v801 = vmax.f32 %v769, 0.0
      %v802 = vmax.f32 %v770, 0.0
      %v803 = vmax.f32 %v771, 0.0
      %v804 = vmax.f32 %v772, 0.0
      %v805 = vmax.f32 %v773, 0.0
      %v806 = vmax.f32 %v774, 0.0
      %v807 = vmax.f32 %v775, 0.0
      %v808 = vmax.f32 %v776, 0.0
      %v809 = vmax.f32 %v777, 0.0
      %v810 = vmax.f32 %v778, 0.0
      %v811 = vmax.f32 %v779, 0.0
      %812 = vst [vmem:[%s275] sm:$0xff] %v780
      %813 = vst [vmem:[%s275 + $0x8] sm:$0xff] %v781
      %814 = vst [vmem:[%s275 + $0x10] sm:$0xff] %v782
      %815 = vst [vmem:[%s275 + $0x18] sm:$0xff] %v783
      %816 = vst [vmem:[%s275 + $0x20] sm:$0xff] %v784
      %817 = vst [vmem:[%s275 + $0x28] sm:$0xff] %v785
      %818 = vst [vmem:[%s275 + $0x30] sm:$0xff] %v786
      %819 = vst [vmem:[%s275 + $0x38] sm:$0xff] %v787
      %820 = vst [vmem:[%s275 + $0x40] sm:$0xff] %v788
      %821 = vst [vmem:[%s275 + $0x48] sm:$0xff] %v789
      %822 = vst [vmem:[%s275 + $0x50] sm:$0xff] %v790
      %823 = vst [vmem:[%s275 + $0x58] sm:$0xff] %v791
      %824 = vst [vmem:[%s275 + $0x60] sm:$0xff] %v792
      %825 = vst [vmem:[%s275 + $0x68] sm:$0xff] %v793
      %826 = vst [vmem:[%s275 + $0x70] sm:$0xff] %v794
      %827 = vst [vmem:[%s275 + $0x78] sm:$0xff] %v795
      %828 = vst [vmem:[%s275 + $0x80] sm:$0xff] %v796
      %829 = vst [vmem:[%s275 + $0x88] sm:$0xff] %v797
      %830 = vst [vmem:[%s275 + $0x90] sm:$0xff] %v798
      %831 = vst [vmem:[%s275 + $0x98] sm:$0xff] %v799
      %832 = vst [vmem:[%s275 + $0xa0] sm:$0xff] %v800
      %833 = vst [vmem:[%s275 + $0xa8] sm:$0xff] %v801
      %834 = vst [vmem:[%s275 + $0xb0] sm:$0xff] %v802
      %835 = vst [vmem:[%s275 + $0xb8] sm:$0xff] %v803
      %836 = vst [vmem:[%s275 + $0xc0] sm:$0xff] %v804
      %837 = vst [vmem:[%s275 + $0xc8] sm:$0xff] %v805
      %838 = vst [vmem:[%s275 + $0xd0] sm:$0xff] %v806
      %839 = vst [vmem:[%s275 + $0xd8] sm:$0xff] %v807
      %840 = vst [vmem:[%s275 + $0xe0] sm:$0xff] %v808
      %841 = vst [vmem:[%s275 + $0xe8] sm:$0xff] %v809
      %842 = vst [vmem:[%s275 + $0xf0] sm:$0xff] %v810
      %843 = vst [vmem:[%s275 + $0xf8] sm:$0xff] %v811
      %s844 = smul.u32 32, %s17
      %p845 = scmp.lt.s32.totalorder %s844, 63
      %s846 = scalar_select %p845, %s844, 63
      %s847 = smul.addr %s846, 8
      %s848 = scalar_lea.vmem %s6, %s847
      // Predicated region
      $region45: #{residual_block_forward.7} parent=43 // pred_check
        %p849 = pneg %p171
      $region46: #{residual_block_forward.7} parent=43 // pred_check_branch
        %851 = sbr.rel (%p849) target = $region48
      $region47: #{residual_block_forward.7} parent=43 // pred_region
        %s852 = smul.u32 32, %s17
      $region48: #{residual_block_forward.7} parent=43 // pred_fallthru
        _
    $region44: #{residual_block_forward.7} parent=5 // pred_fallthru
      _
    %p853 = scmp.le.s32.totalorder 2, %s12
    // Predicated region
    $region49: #{residual_block_forward.7} parent=5 // pred_check
      %p854 = pneg %p853
    $region50: #{residual_block_forward.7} parent=5 // pred_check_branch
      %856 = sbr.rel (%p854) target = $region52
    $region51: #{residual_block_forward.7} parent=5 // pred_region
      %s857 = ssub.s32 %s12, 2
      // Predicated region
      $region53: #{residual_block_forward.7} parent=51 // pred_check
        %p858 = pneg %p177
      $region54: #{residual_block_forward.7} parent=51 // pred_check_branch
        %860 = sbr.rel (%p858) target = $region56
      $region55: #{residual_block_forward.7} parent=51 // pred_region
        %s861 = smul.u32 32, %s18
        %p862 = scmp.lt.s32.totalorder %s861, 63
        %s863 = scalar_select %p862, %s861, 63
        %s864 = smul.addr %s863, 8
        %s865 = scalar_lea.vmem %s6, %s864
      $region56: #{residual_block_forward.7} parent=51 // pred_fallthru
        _
    $region52: #{residual_block_forward.7} parent=5 // pred_fallthru
      _
  $region6: #{residual_block_forward.7} parent=0 // loop_footer
    %s16 = sadd.s32 1, %s12
  $region7: #{residual_block_forward.7} parent=0 // loop_footer_branch
    %11 = sbr.rel target = $region3
  $region8: #{residual_block_forward.7} parent=0 // loop_exit
    _

</llo_original>
